<compile_context>
chip_gen: v7x
topology: tpu7x:2x2x1
jax: 0.10.0
libtpu: 0.0.40
codegen_flags: <defaults>
</compile_context>

<pallas_src>
import math
import functools

import jax
import jax.numpy as jnp
from jax import lax
from jax.experimental import pallas as pl
from jax.experimental.pallas import tpu as pltpu


def _layernorm(x, gamma, beta, eps=1e-6):
    # PyTorch nn.LayerNorm (eps=1e-6 in the module): biased variance, last dim.
    mean = jnp.mean(x, axis=-1, keepdims=True)
    var = jnp.mean((x - mean) ** 2, axis=-1, keepdims=True)
    return (x - mean) * lax.rsqrt(var + eps) * gamma + beta


def decoder_kernel(x_ref,
                   wq_ref, bq_ref, wk_ref, bk_ref, wv_ref, bv_ref,
                   wo_ref, bo_ref, g_att_ref, b_att_ref,
                   wup_ref, bup_ref, wdn_ref, bdn_ref,
                   g_ffn_ref, b_ffn_ref,
                   o_ref,
                   *, nums_head, head_dim, compute_dtype):
    x = x_ref[...]                                  # (S, H) f32 (batch squeezed)
    S, H = x.shape
    xc = x.astype(compute_dtype)

    # --- attention block -----------------------------------------------------
    # Projections: compute_dtype inputs on the MXU, f32 accumulation.
    q = jnp.dot(xc, wq_ref[...], preferred_element_type=jnp.float32) + bq_ref[...]
    k = jnp.dot(xc, wk_ref[...], preferred_element_type=jnp.float32) + bk_ref[...]
    v = jnp.dot(xc, wv_ref[...], preferred_element_type=jnp.float32) + bv_ref[...]

    # Fold the attention scale into q once.
    q = q * jnp.float32(1.0 / math.sqrt(head_dim))

    # Heads batched on the MXU: (S, nh, hd) operands, contract head_dim.
    q_r = q.reshape(S, nums_head, head_dim).astype(compute_dtype)
    k_r = k.reshape(S, nums_head, head_dim).astype(compute_dtype)
    v_r = v.reshape(S, nums_head, head_dim).astype(compute_dtype)

    scores = jnp.einsum('qhd,khd->hqk', q_r, k_r,
                        preferred_element_type=jnp.float32)      # (nh, S, S) f32

    row = lax.broadcasted_iota(jnp.int32, (S, S), 0)
    col = lax.broadcasted_iota(jnp.int32, (S, S), 1)
    causal = (row >= col)[None, :, :]                            # tril mask
    scores = jnp.where(causal, scores, jnp.float32(-1e20))

    # Softmax stats in f32; divide moved to the EUP with approx reciprocal.
    m = jnp.max(scores, axis=-1, keepdims=True)
    e = jnp.exp(scores - m)
    denom = jnp.sum(e, axis=-1, keepdims=True)
    p = e * pl.reciprocal(denom, approx=True)
    # TODO(synk): drop_att (nn.Dropout) skipped — identity in eval/inference.

    att = jnp.einsum('hqk,khd->qhd', p.astype(compute_dtype), v_r,
                     preferred_element_type=jnp.float32).reshape(S, H)
    att = jnp.dot(att.astype(compute_dtype), wo_ref[...],
                  preferred_element_type=jnp.float32) + bo_ref[...]

    h1 = _layernorm(att + x, g_att_ref[...], b_att_ref[...])

    # --- FFN block -----------------------------------------------------------
    up = jnp.dot(h1.astype(compute_dtype), wup_ref[...],
                 preferred_element_type=jnp.float32) + bup_ref[...]
    up = jnp.maximum(up, 0.0)                                    # ReLU
    dn = jnp.dot(up.astype(compute_dtype), wdn_ref[...],
                 preferred_element_type=jnp.float32) + bdn_ref[...]
    # TODO(synk): drop_ffn (nn.Dropout) skipped — identity in eval/inference.
    h2 = _layernorm(dn + h1, g_ffn_ref[...], b_ffn_ref[...])

    o_ref[...] = h2.astype(o_ref.dtype)


def init_params(key, hidden_dim):
    """Deterministic parameter init. Linear weights are returned as (in, out)."""
    ks = jax.random.split(key, 12)
    H, H4 = hidden_dim, hidden_dim * 4

    def lin(k, fan_in, fan_out):
        kw, kb = jax.random.split(k)
        bound = 1.0 / math.sqrt(fan_in)
        w = jax.random.uniform(kw, (fan_in, fan_out), jnp.float32, -bound, bound)
        b = jax.random.uniform(kb, (1, fan_out), jnp.float32, -bound, bound)
        return w, b

    wq, bq = lin(ks[0], H, H)
    wk, bk = lin(ks[1], H, H)
    wv, bv = lin(ks[2], H, H)
    wo, bo = lin(ks[3], H, H)
    wup, bup = lin(ks[4], H, H4)
    wdn, bdn = lin(ks[5], H4, H)
    g_att, b_att = jnp.ones((1, H), jnp.float32), jnp.zeros((1, H), jnp.float32)
    g_ffn, b_ffn = jnp.ones((1, H), jnp.float32), jnp.zeros((1, H), jnp.float32)
    return dict(wq=wq, bq=bq, wk=wk, bk=bk, wv=wv, bv=bv, wo=wo, bo=bo,
                g_att=g_att, b_att=b_att, wup=wup, bup=bup, wdn=wdn, bdn=bdn,
                g_ffn=g_ffn, b_ffn=b_ffn)


_PARAM_ORDER = ("wq", "bq", "wk", "bk", "wv", "bv", "wo", "bo",
                "g_att", "b_att", "wup", "bup", "wdn", "bdn", "g_ffn", "b_ffn")
_MATMUL_WEIGHTS = frozenset({"wq", "wk", "wv", "wo", "wup", "wdn"})


def simple_decoder_forward(x, params, nums_head, compute_dtype=jnp.bfloat16):
    B, S, H = x.shape
    head_dim = H // nums_head

    # Cast the big matmul weights to the compute dtype in the wrapper so their
    # HBM->VMEM DMA is halved in bf16 mode. Biases / LayerNorm params stay f32.
    weights = []
    for name in _PARAM_ORDER:
        w = params[name]
        if name in _MATMUL_WEIGHTS:
            w = w.astype(compute_dtype)
        weights.append(w)

    def full_spec(arr):
        nd = arr.ndim
        # Full-array block, constant index -> stays resident across grid steps.
        return pl.BlockSpec(arr.shape, lambda *_, _nd=nd: (0,) * _nd)

    in_specs = [pl.BlockSpec((None, S, H), lambda b: (b, 0, 0))]   # batch squeezed
    in_specs += [full_spec(w) for w in weights]

    kernel = functools.partial(decoder_kernel, nums_head=nums_head,
                               head_dim=head_dim, compute_dtype=compute_dtype)

    return pl.pallas_call(
        kernel,
        out_shape=jax.ShapeDtypeStruct((B, S, H), x.dtype),
        grid=(B,),
        in_specs=in_specs,
        out_specs=pl.BlockSpec((None, S, H), lambda b: (b, 0, 0)),
        compiler_params=pltpu.CompilerParams(
            dimension_semantics=("parallel",)),
    )(x, *weights)


def reference_forward(x, params, nums_head):
    """Pure-JAX f32 reference mirroring the PyTorch module (eval mode)."""
    B, S, H = x.shape
    hd = H // nums_head

    def proj(a, w, b):
        return a @ w + b

    q = proj(x, params["wq"], params["bq"]).reshape(B, S, nums_head, hd).transpose(0, 2, 1, 3)
    k = proj(x, params["wk"], params["bk"]).reshape(B, S, nums_head, hd).transpose(0, 2, 1, 3)
    v = proj(x, params["wv"], params["bv"]).reshape(B, S, nums_head, hd).transpose(0, 2, 1, 3)
    scores = jnp.einsum("bhqd,bhkd->bhqk", q, k) / math.sqrt(hd)
    mask = jnp.tril(jnp.ones((S, S), bool))
    scores = jnp.where(mask, scores, -1e20)
    p = jax.nn.softmax(scores, axis=-1)
    att = jnp.einsum("bhqk,bhkd->bhqd", p, v).transpose(0, 2, 1, 3).reshape(B, S, H)
    att = proj(att, params["wo"], params["bo"])

    def ln(a, g, bta):
        mu = a.mean(-1, keepdims=True)
        var = ((a - mu) ** 2).mean(-1, keepdims=True)
        return (a - mu) / jnp.sqrt(var + 1e-6) * g + bta

    h1 = ln(att + x, params["g_att"], params["b_att"])
    up = jax.nn.relu(proj(h1, params["wup"], params["bup"]))
    dn = proj(up, params["wdn"], params["bdn"])
    return ln(dn + h1, params["g_ffn"], params["b_ffn"])


if __name__ == "__main__":
    batch, seq, hidden_dim, nums_head = 2, 8, 32, 4

    key = jax.random.PRNGKey(0)
    kx, kp = jax.random.split(key)
    x = jax.random.normal(kx, (batch, seq, hidden_dim), jnp.float32)
    params = init_params(kp, hidden_dim)

    ref = reference_forward(x, params, nums_head)

    # f32 matmul path: tight check (only deviation from the reference is the
    # approx EUP reciprocal in the softmax denominator).
    out_f32 = jax.block_until_ready(
        simple_decoder_forward(x, params, nums_head, compute_dtype=jnp.float32))
    assert out_f32.shape == (batch, seq, hidden_dim)
    assert jnp.allclose(out_f32, ref, atol=2e-3, rtol=2e-3), "f32 path mismatch"

    # Default bf16 matmul path (the perf config): sanity check against the f32
    # reference with a tolerance appropriate for bf16 MXU inputs.
    out_bf16 = jax.block_until_ready(simple_decoder_forward(x, params, nums_head))
    assert out_bf16.shape == (batch, seq, hidden_dim)
    assert jnp.allclose(out_bf16, ref, atol=1e-1, rtol=1e-1), "bf16 path mismatch"

    print("KERNEL_OK")
</pallas_src>

<mosaic_0001>
module attributes {stable_mosaic.version = 11 : i64} {
  func.func @decoder_kernel(%arg0: i32, %arg1: memref<1x8x32xf32, #tpu.memory_space<vmem>>, %arg2: memref<32x32xf32, #tpu.memory_space<vmem>>, %arg3: memref<1x32xf32, #tpu.memory_space<vmem>>, %arg4: memref<32x32xf32, #tpu.memory_space<vmem>>, %arg5: memref<1x32xf32, #tpu.memory_space<vmem>>, %arg6: memref<32x32xf32, #tpu.memory_space<vmem>>, %arg7: memref<1x32xf32, #tpu.memory_space<vmem>>, %arg8: memref<32x32xf32, #tpu.memory_space<vmem>>, %arg9: memref<1x32xf32, #tpu.memory_space<vmem>>, %arg10: memref<1x32xf32, #tpu.memory_space<vmem>>, %arg11: memref<1x32xf32, #tpu.memory_space<vmem>>, %arg12: memref<32x128xf32, #tpu.memory_space<vmem>>, %arg13: memref<1x128xf32, #tpu.memory_space<vmem>>, %arg14: memref<128x32xf32, #tpu.memory_space<vmem>>, %arg15: memref<1x32xf32, #tpu.memory_space<vmem>>, %arg16: memref<1x32xf32, #tpu.memory_space<vmem>>, %arg17: memref<1x32xf32, #tpu.memory_space<vmem>>, %arg18: memref<1x8x32xf32, #tpu.memory_space<vmem>>) attributes {dimension_semantics = [#tpu.dimension_semantics<parallel>], iteration_bounds = array<i64: 2>, scalar_prefetch = 0 : i64, scratch_operands = 0 : i64, tpu.core_type = #tpu.core_type<tc>, window_params = [{transform_indices = @transform_0, window_bounds = array<i64: 1, 8, 32>}, {pipeline_mode = #tpu.pipeline_mode<synchronous>, transform_indices = @transform_1, window_bounds = array<i64: 32, 32>}, {pipeline_mode = #tpu.pipeline_mode<synchronous>, transform_indices = @transform_2, window_bounds = array<i64: 1, 32>}, {pipeline_mode = #tpu.pipeline_mode<synchronous>, transform_indices = @transform_3, window_bounds = array<i64: 32, 32>}, {pipeline_mode = #tpu.pipeline_mode<synchronous>, transform_indices = @transform_4, window_bounds = array<i64: 1, 32>}, {pipeline_mode = #tpu.pipeline_mode<synchronous>, transform_indices = @transform_5, window_bounds = array<i64: 32, 32>}, {pipeline_mode = #tpu.pipeline_mode<synchronous>, transform_indices = @transform_6, window_bounds = array<i64: 1, 32>}, {pipeline_mode = #tpu.pipeline_mode<synchronous>, transform_indices = @transform_7, window_bounds = array<i64: 32, 32>}, {pipeline_mode = #tpu.pipeline_mode<synchronous>, transform_indices = @transform_8, window_bounds = array<i64: 1, 32>}, {pipeline_mode = #tpu.pipeline_mode<synchronous>, transform_indices = @transform_9, window_bounds = array<i64: 1, 32>}, {pipeline_mode = #tpu.pipeline_mode<synchronous>, transform_indices = @transform_10, window_bounds = array<i64: 1, 32>}, {pipeline_mode = #tpu.pipeline_mode<synchronous>, transform_indices = @transform_11, window_bounds = array<i64: 32, 128>}, {pipeline_mode = #tpu.pipeline_mode<synchronous>, transform_indices = @transform_12, window_bounds = array<i64: 1, 128>}, {pipeline_mode = #tpu.pipeline_mode<synchronous>, transform_indices = @transform_13, window_bounds = array<i64: 128, 32>}, {pipeline_mode = #tpu.pipeline_mode<synchronous>, transform_indices = @transform_14, window_bounds = array<i64: 1, 32>}, {pipeline_mode = #tpu.pipeline_mode<synchronous>, transform_indices = @transform_15, window_bounds = array<i64: 1, 32>}, {pipeline_mode = #tpu.pipeline_mode<synchronous>, transform_indices = @transform_16, window_bounds = array<i64: 1, 32>}, {transform_indices = @transform_17, window_bounds = array<i64: 1, 8, 32>}]} {
    %c0 = arith.constant 0 : index
    %c0_0 = arith.constant 0 : index
    %c0_1 = arith.constant 0 : index
    %0 = vector.load %arg1[%c0, %c0_0, %c0_1] : memref<1x8x32xf32, #tpu.memory_space<vmem>>, vector<1x8x32xf32>
    %1 = vector.shape_cast %0 : vector<1x8x32xf32> to vector<8x32xf32>
    %c0_2 = arith.constant 0 : index
    %c0_3 = arith.constant 0 : index
    %2 = vector.load %arg2[%c0_2, %c0_3] : memref<32x32xf32, #tpu.memory_space<vmem>>, vector<32x32xf32>
    %cst = arith.constant dense<0.000000e+00> : vector<8x32xf32>
    %3 = tpu.matmul %1, %2, %cst {dimension_numbers = #tpu.dot_dimension_numbers<[1], [0], [0], [1], [0, 0, 1, 1], [], []>} : vector<8x32xf32>, vector<32x32xf32>, vector<8x32xf32> -> vector<8x32xf32>
    %c0_4 = arith.constant 0 : index
    %c0_5 = arith.constant 0 : index
    %4 = vector.load %arg3[%c0_4, %c0_5] : memref<1x32xf32, #tpu.memory_space<vmem>>, vector<1x32xf32>
    %5 = vector.broadcast %4 : vector<1x32xf32> to vector<8x32xf32>
    %6 = arith.addf %3, %5 : vector<8x32xf32>
    %c0_6 = arith.constant 0 : index
    %c0_7 = arith.constant 0 : index
    %7 = vector.load %arg4[%c0_6, %c0_7] : memref<32x32xf32, #tpu.memory_space<vmem>>, vector<32x32xf32>
    %cst_8 = arith.constant dense<0.000000e+00> : vector<8x32xf32>
    %8 = tpu.matmul %1, %7, %cst_8 {dimension_numbers = #tpu.dot_dimension_numbers<[1], [0], [0], [1], [0, 0, 1, 1], [], []>} : vector<8x32xf32>, vector<32x32xf32>, vector<8x32xf32> -> vector<8x32xf32>
    %c0_9 = arith.constant 0 : index
    %c0_10 = arith.constant 0 : index
    %9 = vector.load %arg5[%c0_9, %c0_10] : memref<1x32xf32, #tpu.memory_space<vmem>>, vector<1x32xf32>
    %10 = vector.broadcast %9 : vector<1x32xf32> to vector<8x32xf32>
    %11 = arith.addf %8, %10 : vector<8x32xf32>
    %c0_11 = arith.constant 0 : index
    %c0_12 = arith.constant 0 : index
    %12 = vector.load %arg6[%c0_11, %c0_12] : memref<32x32xf32, #tpu.memory_space<vmem>>, vector<32x32xf32>
    %cst_13 = arith.constant dense<0.000000e+00> : vector<8x32xf32>
    %13 = tpu.matmul %1, %12, %cst_13 {dimension_numbers = #tpu.dot_dimension_numbers<[1], [0], [0], [1], [0, 0, 1, 1], [], []>} : vector<8x32xf32>, vector<32x32xf32>, vector<8x32xf32> -> vector<8x32xf32>
    %c0_14 = arith.constant 0 : index
    %c0_15 = arith.constant 0 : index
    %14 = vector.load %arg7[%c0_14, %c0_15] : memref<1x32xf32, #tpu.memory_space<vmem>>, vector<1x32xf32>
    %15 = vector.broadcast %14 : vector<1x32xf32> to vector<8x32xf32>
    %16 = arith.addf %13, %15 : vector<8x32xf32>
    %cst_16 = arith.constant 0.353553385 : f32
    %17 = vector.broadcast %cst_16 : f32 to vector<8x32xf32>
    %18 = arith.mulf %6, %17 : vector<8x32xf32>
    %19 = vector.shape_cast %18 : vector<8x32xf32> to vector<8x4x8xf32>
    %20 = vector.shape_cast %11 : vector<8x32xf32> to vector<8x4x8xf32>
    %21 = vector.shape_cast %16 : vector<8x32xf32> to vector<8x4x8xf32>
    "tpu.trace_start"() <{level = 10 : i32, message = "qhd,khd->hqk"}> : () -> ()
    %cst_17 = arith.constant dense<0.000000e+00> : vector<4x8x8xf32>
    %22 = tpu.matmul %19, %20, %cst_17 {dimension_numbers = #tpu.dot_dimension_numbers<[2], [2], [0], [0], [0, 1, 0, 0, 1, 0], [1], [1]>} : vector<8x4x8xf32>, vector<8x4x8xf32>, vector<4x8x8xf32> -> vector<4x8x8xf32>
    "tpu.trace_stop"() : () -> ()
    %23 = tpu.iota {dimensions = array<i32: 0>} : vector<8x8xi32>
    %24 = tpu.iota {dimensions = array<i32: 1>} : vector<8x8xi32>
    %25 = arith.cmpi sge, %23, %24 : vector<8x8xi32>
    %26 = vector.shape_cast %25 : vector<8x8xi1> to vector<1x8x8xi1>
    %cst_18 = arith.constant -1.000000e+20 : f32
    %27 = vector.shape_cast %26 : vector<1x8x8xi1> to vector<1x8x8xi1>
    %28 = vector.broadcast %27 : vector<1x8x8xi1> to vector<4x8x8xi1>
    %29 = vector.broadcast %cst_18 : f32 to vector<4x8x8xf32>
    %30 = arith.select %28, %22, %29 : vector<4x8x8xi1>, vector<4x8x8xf32>
    %cst_19 = arith.constant dense<0xFF800000> : vector<4x8xf32>
    %31 = vector.multi_reduction <maximumf>, %30, %cst_19 [2] : vector<4x8x8xf32> to vector<4x8xf32>
    %32 = vector.shape_cast %31 : vector<4x8xf32> to vector<4x8x1xf32>
    %33 = vector.broadcast %32 : vector<4x8x1xf32> to vector<4x8x8xf32>
    %34 = arith.subf %30, %33 : vector<4x8x8xf32>
    %35 = math.exp %34 : vector<4x8x8xf32>
    %cst_20 = arith.constant dense<0.000000e+00> : vector<4x8xf32>
    %36 = vector.multi_reduction <add>, %35, %cst_20 [2] : vector<4x8x8xf32> to vector<4x8xf32>
    %37 = vector.shape_cast %36 : vector<4x8xf32> to vector<4x8x1xf32>
    %38 = tpu.reciprocal %37 {approx = true} : vector<4x8x1xf32> -> vector<4x8x1xf32>
    %39 = vector.broadcast %38 : vector<4x8x1xf32> to vector<4x8x8xf32>
    %40 = arith.mulf %35, %39 : vector<4x8x8xf32>
    "tpu.trace_start"() <{level = 10 : i32, message = "hqk,khd->qhd"}> : () -> ()
    %cst_21 = arith.constant dense<0.000000e+00> : vector<4x8x8xf32>
    %41 = tpu.matmul %21, %40, %cst_21 {dimension_numbers = #tpu.dot_dimension_numbers<[0], [2], [2], [1], [0, 1, 0, 2, 1, 1], [1], [0]>} : vector<8x4x8xf32>, vector<4x8x8xf32>, vector<4x8x8xf32> -> vector<4x8x8xf32>
    %42 = tpu.transpose %41, [2, 0, 1] : vector<4x8x8xf32> -> vector<8x4x8xf32>
    "tpu.trace_stop"() : () -> ()
    %43 = vector.shape_cast %42 : vector<8x4x8xf32> to vector<8x32xf32>
    %c0_22 = arith.constant 0 : index
    %c0_23 = arith.constant 0 : index
    %44 = vector.load %arg8[%c0_22, %c0_23] : memref<32x32xf32, #tpu.memory_space<vmem>>, vector<32x32xf32>
    %cst_24 = arith.constant dense<0.000000e+00> : vector<8x32xf32>
    %45 = tpu.matmul %43, %44, %cst_24 {dimension_numbers = #tpu.dot_dimension_numbers<[1], [0], [0], [1], [0, 0, 1, 1], [], []>} : vector<8x32xf32>, vector<32x32xf32>, vector<8x32xf32> -> vector<8x32xf32>
    %c0_25 = arith.constant 0 : index
    %c0_26 = arith.constant 0 : index
    %46 = vector.load %arg9[%c0_25, %c0_26] : memref<1x32xf32, #tpu.memory_space<vmem>>, vector<1x32xf32>
    %47 = vector.broadcast %46 : vector<1x32xf32> to vector<8x32xf32>
    %48 = arith.addf %45, %47 : vector<8x32xf32>
    %49 = arith.addf %48, %1 : vector<8x32xf32>
    %c0_27 = arith.constant 0 : index
    %c0_28 = arith.constant 0 : index
    %50 = vector.load %arg10[%c0_27, %c0_28] : memref<1x32xf32, #tpu.memory_space<vmem>>, vector<1x32xf32>
    %c0_29 = arith.constant 0 : index
    %c0_30 = arith.constant 0 : index
    %51 = vector.load %arg11[%c0_29, %c0_30] : memref<1x32xf32, #tpu.memory_space<vmem>>, vector<1x32xf32>
    %cst_31 = arith.constant dense<0.000000e+00> : vector<8xf32>
    %52 = vector.multi_reduction <add>, %49, %cst_31 [1] : vector<8x32xf32> to vector<8xf32>
    %53 = vector.shape_cast %52 : vector<8xf32> to vector<8x1xf32>
    %cst_32 = arith.constant 3.200000e+01 : f32
    %54 = vector.broadcast %cst_32 : f32 to vector<8x1xf32>
    %55 = arith.divf %53, %54 : vector<8x1xf32>
    %56 = vector.broadcast %55 : vector<8x1xf32> to vector<8x32xf32>
    %57 = arith.subf %49, %56 : vector<8x32xf32>
    %58 = arith.mulf %57, %57 : vector<8x32xf32>
    %cst_33 = arith.constant dense<0.000000e+00> : vector<8xf32>
    %59 = vector.multi_reduction <add>, %58, %cst_33 [1] : vector<8x32xf32> to vector<8xf32>
    %60 = vector.shape_cast %59 : vector<8xf32> to vector<8x1xf32>
    %cst_34 = arith.constant 3.200000e+01 : f32
    %61 = vector.broadcast %cst_34 : f32 to vector<8x1xf32>
    %62 = arith.divf %60, %61 : vector<8x1xf32>
    %63 = vector.broadcast %55 : vector<8x1xf32> to vector<8x32xf32>
    %64 = arith.subf %49, %63 : vector<8x32xf32>
    %cst_35 = arith.constant 9.99999997E-7 : f32
    %65 = vector.broadcast %cst_35 : f32 to vector<8x1xf32>
    %66 = arith.addf %62, %65 : vector<8x1xf32>
    %67 = math.rsqrt %66 : vector<8x1xf32>
    %68 = vector.broadcast %67 : vector<8x1xf32> to vector<8x32xf32>
    %69 = arith.mulf %64, %68 : vector<8x32xf32>
    %70 = vector.broadcast %50 : vector<1x32xf32> to vector<8x32xf32>
    %71 = arith.mulf %69, %70 : vector<8x32xf32>
    %72 = vector.broadcast %51 : vector<1x32xf32> to vector<8x32xf32>
    %73 = arith.addf %71, %72 : vector<8x32xf32>
    %c0_36 = arith.constant 0 : index
    %c0_37 = arith.constant 0 : index
    %74 = vector.load %arg12[%c0_36, %c0_37] : memref<32x128xf32, #tpu.memory_space<vmem>>, vector<32x128xf32>
    %cst_38 = arith.constant dense<0.000000e+00> : vector<8x128xf32>
    %75 = tpu.matmul %73, %74, %cst_38 {dimension_numbers = #tpu.dot_dimension_numbers<[1], [0], [0], [1], [0, 0, 1, 1], [], []>} : vector<8x32xf32>, vector<32x128xf32>, vector<8x128xf32> -> vector<8x128xf32>
    %c0_39 = arith.constant 0 : index
    %c0_40 = arith.constant 0 : index
    %76 = vector.load %arg13[%c0_39, %c0_40] : memref<1x128xf32, #tpu.memory_space<vmem>>, vector<1x128xf32>
    %77 = vector.broadcast %76 : vector<1x128xf32> to vector<8x128xf32>
    %78 = arith.addf %75, %77 : vector<8x128xf32>
    %cst_41 = arith.constant 0.000000e+00 : f32
    %79 = vector.broadcast %cst_41 : f32 to vector<8x128xf32>
    %80 = arith.maximumf %78, %79 : vector<8x128xf32>
    %c0_42 = arith.constant 0 : index
    %c0_43 = arith.constant 0 : index
    %81 = vector.load %arg14[%c0_42, %c0_43] : memref<128x32xf32, #tpu.memory_space<vmem>>, vector<128x32xf32>
    %cst_44 = arith.constant dense<0.000000e+00> : vector<8x32xf32>
    %82 = tpu.matmul %80, %81, %cst_44 {dimension_numbers = #tpu.dot_dimension_numbers<[1], [0], [0], [1], [0, 0, 1, 1], [], []>} : vector<8x128xf32>, vector<128x32xf32>, vector<8x32xf32> -> vector<8x32xf32>
    %c0_45 = arith.constant 0 : index
    %c0_46 = arith.constant 0 : index
    %83 = vector.load %arg15[%c0_45, %c0_46] : memref<1x32xf32, #tpu.memory_space<vmem>>, vector<1x32xf32>
    %84 = vector.broadcast %83 : vector<1x32xf32> to vector<8x32xf32>
    %85 = arith.addf %82, %84 : vector<8x32xf32>
    %86 = arith.addf %85, %73 : vector<8x32xf32>
    %c0_47 = arith.constant 0 : index
    %c0_48 = arith.constant 0 : index
    %87 = vector.load %arg16[%c0_47, %c0_48] : memref<1x32xf32, #tpu.memory_space<vmem>>, vector<1x32xf32>
    %c0_49 = arith.constant 0 : index
    %c0_50 = arith.constant 0 : index
    %88 = vector.load %arg17[%c0_49, %c0_50] : memref<1x32xf32, #tpu.memory_space<vmem>>, vector<1x32xf32>
    %cst_51 = arith.constant dense<0.000000e+00> : vector<8xf32>
    %89 = vector.multi_reduction <add>, %86, %cst_51 [1] : vector<8x32xf32> to vector<8xf32>
    %90 = vector.shape_cast %89 : vector<8xf32> to vector<8x1xf32>
    %cst_52 = arith.constant 3.200000e+01 : f32
    %91 = vector.broadcast %cst_52 : f32 to vector<8x1xf32>
    %92 = arith.divf %90, %91 : vector<8x1xf32>
    %93 = vector.broadcast %92 : vector<8x1xf32> to vector<8x32xf32>
    %94 = arith.subf %86, %93 : vector<8x32xf32>
    %95 = arith.mulf %94, %94 : vector<8x32xf32>
    %cst_53 = arith.constant dense<0.000000e+00> : vector<8xf32>
    %96 = vector.multi_reduction <add>, %95, %cst_53 [1] : vector<8x32xf32> to vector<8xf32>
    %97 = vector.shape_cast %96 : vector<8xf32> to vector<8x1xf32>
    %cst_54 = arith.constant 3.200000e+01 : f32
    %98 = vector.broadcast %cst_54 : f32 to vector<8x1xf32>
    %99 = arith.divf %97, %98 : vector<8x1xf32>
    %100 = vector.broadcast %92 : vector<8x1xf32> to vector<8x32xf32>
    %101 = arith.subf %86, %100 : vector<8x32xf32>
    %cst_55 = arith.constant 9.99999997E-7 : f32
    %102 = vector.broadcast %cst_55 : f32 to vector<8x1xf32>
    %103 = arith.addf %99, %102 : vector<8x1xf32>
    %104 = math.rsqrt %103 : vector<8x1xf32>
    %105 = vector.broadcast %104 : vector<8x1xf32> to vector<8x32xf32>
    %106 = arith.mulf %101, %105 : vector<8x32xf32>
    %107 = vector.broadcast %87 : vector<1x32xf32> to vector<8x32xf32>
    %108 = arith.mulf %106, %107 : vector<8x32xf32>
    %109 = vector.broadcast %88 : vector<1x32xf32> to vector<8x32xf32>
    %110 = arith.addf %108, %109 : vector<8x32xf32>
    %c0_56 = arith.constant 0 : index
    %c0_57 = arith.constant 0 : index
    %c0_58 = arith.constant 0 : index
    %111 = vector.load %arg18[%c0_56, %c0_57, %c0_58] : memref<1x8x32xf32, #tpu.memory_space<vmem>>, vector<1x8x32xf32>
    %112 = vector.shape_cast %111 : vector<1x8x32xf32> to vector<8x32xf32>
    %113 = vector.shape_cast %110 : vector<8x32xf32> to vector<1x8x32xf32>
    tpu.vector_store %arg18[%c0_56, %c0_57, %c0_58], %113 {strides = array<i32>} : memref<1x8x32xf32, #tpu.memory_space<vmem>>, vector<1x8x32xf32>,
    return
  }
  func.func @transform_0(%arg0: i32) -> (i32, i32, i32) {
    %c0_i32 = arith.constant 0 : i32
    %c0_i32_0 = arith.constant 0 : i32
    %c0_i32_1 = arith.constant 0 : i32
    return %arg0, %c0_i32, %c0_i32_0 : i32, i32, i32
  }
  func.func @transform_1(%arg0: i32) -> (i32, i32) {
    %c0_i32 = arith.constant 0 : i32
    %c0_i32_0 = arith.constant 0 : i32
    %c0_i32_1 = arith.constant 0 : i32
    return %c0_i32, %c0_i32_0 : i32, i32
  }
  func.func @transform_2(%arg0: i32) -> (i32, i32) {
    %c0_i32 = arith.constant 0 : i32
    %c0_i32_0 = arith.constant 0 : i32
    %c0_i32_1 = arith.constant 0 : i32
    return %c0_i32, %c0_i32_0 : i32, i32
  }
  func.func @transform_3(%arg0: i32) -> (i32, i32) {
    %c0_i32 = arith.constant 0 : i32
    %c0_i32_0 = arith.constant 0 : i32
    %c0_i32_1 = arith.constant 0 : i32
    return %c0_i32, %c0_i32_0 : i32, i32
  }
  func.func @transform_4(%arg0: i32) -> (i32, i32) {
    %c0_i32 = arith.constant 0 : i32
    %c0_i32_0 = arith.constant 0 : i32
    %c0_i32_1 = arith.constant 0 : i32
    return %c0_i32, %c0_i32_0 : i32, i32
  }
  func.func @transform_5(%arg0: i32) -> (i32, i32) {
    %c0_i32 = arith.constant 0 : i32
    %c0_i32_0 = arith.constant 0 : i32
    %c0_i32_1 = arith.constant 0 : i32
    return %c0_i32, %c0_i32_0 : i32, i32
  }
  func.func @transform_6(%arg0: i32) -> (i32, i32) {
    %c0_i32 = arith.constant 0 : i32
    %c0_i32_0 = arith.constant 0 : i32
    %c0_i32_1 = arith.constant 0 : i32
    return %c0_i32, %c0_i32_0 : i32, i32
  }
  func.func @transform_7(%arg0: i32) -> (i32, i32) {
    %c0_i32 = arith.constant 0 : i32
    %c0_i32_0 = arith.constant 0 : i32
    %c0_i32_1 = arith.constant 0 : i32
    return %c0_i32, %c0_i32_0 : i32, i32
  }
  func.func @transform_8(%arg0: i32) -> (i32, i32) {
    %c0_i32 = arith.constant 0 : i32
    %c0_i32_0 = arith.constant 0 : i32
    %c0_i32_1 = arith.constant 0 : i32
    return %c0_i32, %c0_i32_0 : i32, i32
  }
  func.func @transform_9(%arg0: i32) -> (i32, i32) {
    %c0_i32 = arith.constant 0 : i32
    %c0_i32_0 = arith.constant 0 : i32
    %c0_i32_1 = arith.constant 0 : i32
    return %c0_i32, %c0_i32_0 : i32, i32
  }
  func.func @transform_10(%arg0: i32) -> (i32, i32) {
    %c0_i32 = arith.constant 0 : i32
    %c0_i32_0 = arith.constant 0 : i32
    %c0_i32_1 = arith.constant 0 : i32
    return %c0_i32, %c0_i32_0 : i32, i32
  }
  func.func @transform_11(%arg0: i32) -> (i32, i32) {
    %c0_i32 = arith.constant 0 : i32
    %c0_i32_0 = arith.constant 0 : i32
    %c0_i32_1 = arith.constant 0 : i32
    return %c0_i32, %c0_i32_0 : i32, i32
  }
  func.func @transform_12(%arg0: i32) -> (i32, i32) {
    %c0_i32 = arith.constant 0 : i32
    %c0_i32_0 = arith.constant 0 : i32
    %c0_i32_1 = arith.constant 0 : i32
    return %c0_i32, %c0_i32_0 : i32, i32
  }
  func.func @transform_13(%arg0: i32) -> (i32, i32) {
    %c0_i32 = arith.constant 0 : i32
    %c0_i32_0 = arith.constant 0 : i32
    %c0_i32_1 = arith.constant 0 : i32
    return %c0_i32, %c0_i32_0 : i32, i32
  }
  func.func @transform_14(%arg0: i32) -> (i32, i32) {
    %c0_i32 = arith.constant 0 : i32
    %c0_i32_0 = arith.constant 0 : i32
    %c0_i32_1 = arith.constant 0 : i32
    return %c0_i32, %c0_i32_0 : i32, i32
  }
  func.func @transform_15(%arg0: i32) -> (i32, i32) {
    %c0_i32 = arith.constant 0 : i32
    %c0_i32_0 = arith.constant 0 : i32
    %c0_i32_1 = arith.constant 0 : i32
    return %c0_i32, %c0_i32_0 : i32, i32
  }
  func.func @transform_16(%arg0: i32) -> (i32, i32) {
    %c0_i32 = arith.constant 0 : i32
    %c0_i32_0 = arith.constant 0 : i32
    %c0_i32_1 = arith.constant 0 : i32
    return %c0_i32, %c0_i32_0 : i32, i32
  }
  func.func @transform_17(%arg0: i32) -> (i32, i32, i32) {
    %c0_i32 = arith.constant 0 : i32
    %c0_i32_0 = arith.constant 0 : i32
    %c0_i32_1 = arith.constant 0 : i32
    return %arg0, %c0_i32, %c0_i32_0 : i32, i32, i32
  }
}

</mosaic_0001>

<llo_original>
// kernel: tpu_custom_call.1
$region0: #{tpu_custom_call.1}
  #allocation0 [shape = 'u32[]', space=smem, size = 0x4, offset = 0x4, fixed_abs, tag = 'smem constant byte address 0x4 - core index']
  #allocation1 [shape = 'u32[144,128]{1,0:T(1,128)}', space=vmem, size = 0x12000, scoped, tag = 'internal scratch']
  %s0 = inlined_call_operand.hbm [shape: f32[2,8,32], index: 0, kind: input, shape index: {}]
  %s1 = inlined_call_operand.vmem [shape: f32[32,32], index: 1, kind: input, shape index: {}]
  %s2 = inlined_call_operand.vmem [shape: f32[1,32], index: 2, kind: input, shape index: {}]
  %s3 = inlined_call_operand.vmem [shape: f32[32,32], index: 3, kind: input, shape index: {}]
  %s4 = inlined_call_operand.vmem [shape: f32[1,32], index: 4, kind: input, shape index: {}]
  %s5 = inlined_call_operand.vmem [shape: f32[32,32], index: 5, kind: input, shape index: {}]
  %s6 = inlined_call_operand.vmem [shape: f32[1,32], index: 6, kind: input, shape index: {}]
  %s7 = inlined_call_operand.vmem [shape: f32[32,32], index: 7, kind: input, shape index: {}]
  %s8 = inlined_call_operand.vmem [shape: f32[1,32], index: 8, kind: input, shape index: {}]
  %s9 = inlined_call_operand.vmem [shape: f32[1,32], index: 9, kind: input, shape index: {}]
  %s10 = inlined_call_operand.vmem [shape: f32[1,32], index: 10, kind: input, shape index: {}]
  %s11 = inlined_call_operand.vmem [shape: f32[32,128], index: 11, kind: input, shape index: {}]
  %s12 = inlined_call_operand.vmem [shape: f32[1,128], index: 12, kind: input, shape index: {}]
  %s13 = inlined_call_operand.vmem [shape: f32[128,32], index: 13, kind: input, shape index: {}]
  %s14 = inlined_call_operand.vmem [shape: f32[1,32], index: 14, kind: input, shape index: {}]
  %s15 = inlined_call_operand.vmem [shape: f32[1,32], index: 15, kind: input, shape index: {}]
  %s16 = inlined_call_operand.vmem [shape: f32[1,32], index: 16, kind: input, shape index: {}]
  %s17 = inlined_call_operand.hbm [shape: f32[2,8,32], index: 17, kind: output, shape index: {}]
  %s18 = sld [smem:[#allocation0]]
  $region105: #{tpu_custom_call.1} parent=0
    _
  %s20 = ssub.s32 1, %s18
  %s21 = scalar_select 0, %s20, %s18
  $region1: #{tpu_custom_call.1} parent=0
    #allocation2 [shape = 'u8[8192]{0}', space=vmem, size = 0x2000, scoped, tag = 'input window, operand 0']
    #allocation3 [shape = 's32[2]{0}', space=sflag, size = 0x8, scoped, tag = 'scoped memory for tpu_custom_call.1']
    #allocation4 [shape = 's32[2]{0}', space=sflag, size = 0x8, scoped, tag = 'scoped memory for tpu_custom_call.1']
    #allocation5 [shape = 'u8[8192]{0}', space=vmem, size = 0x2000, scoped, tag = 'output window, operand 0']
    %22 = vsyncpa [#allocation3], 0
    %s23 = scalar_lea.sflag [#allocation3], 1
    %24 = vsyncpa %s23, 0
    %25 = vsyncpa [#allocation4], 0
    %s26 = scalar_lea.sflag [#allocation4], 1
    %27 = vsyncpa %s26, 0
    loop: start=0, step=1, limit=4
    $region2: #{tpu_custom_call.1} parent=1 // loop_pre_header
      _
    $region3: #{tpu_custom_call.1} parent=1 // loop_header
      %s29 = sphi 0, %s33
      %p30 = scmp.ge.s32.totalorder %s29, 4
      %s39 = sphi 0, %s41
      %s42 = sphi 0, %s39
      %s43 = sphi 0, %s42
      %s59 = sphi 0, %s43
      %s63 = sphi 0, %s63
      %s65 = sphi 0, %s63
      %s66 = sphi 0, %s65
      %s80 = sphi 0, %s66
      %s84 = sphi 0, %s84
      %s86 = sphi 0, %s84
      %s87 = sphi 0, %s86
      %s101 = sphi 0, %s87
      %s105 = sphi 0, %s105
      %s107 = sphi 0, %s105
      %s108 = sphi 0, %s107
      %s122 = sphi 0, %s108
      %s126 = sphi 0, %s126
      %s128 = sphi 0, %s126
      %s129 = sphi 0, %s128
      %s143 = sphi 0, %s129
      %s147 = sphi 0, %s147
      %s149 = sphi 0, %s147
      %s150 = sphi 0, %s149
      %s164 = sphi 0, %s150
      %s168 = sphi 0, %s168
      %s170 = sphi 0, %s168
      %s171 = sphi 0, %s170
      %s185 = sphi 0, %s171
      %s189 = sphi 0, %s189
      %s191 = sphi 0, %s189
      %s192 = sphi 0, %s191
      %s206 = sphi 0, %s192
      %s210 = sphi 0, %s210
      %s212 = sphi 0, %s210
      %s213 = sphi 0, %s212
      %s227 = sphi 0, %s213
      %s231 = sphi 0, %s231
      %s233 = sphi 0, %s231
      %s234 = sphi 0, %s233
      %s248 = sphi 0, %s234
      %s252 = sphi 0, %s252
      %s254 = sphi 0, %s252
      %s255 = sphi 0, %s254
      %s269 = sphi 0, %s255
      %s273 = sphi 0, %s273
      %s275 = sphi 0, %s273
      %s276 = sphi 0, %s275
      %s290 = sphi 0, %s276
      %s294 = sphi 0, %s294
      %s296 = sphi 0, %s294
      %s297 = sphi 0, %s296
      %s311 = sphi 0, %s297
      %s315 = sphi 0, %s315
      %s317 = sphi 0, %s315
      %s318 = sphi 0, %s317
      %s332 = sphi 0, %s318
      %s336 = sphi 0, %s336
      %s338 = sphi 0, %s336
      %s339 = sphi 0, %s338
      %s353 = sphi 0, %s339
      %s357 = sphi 0, %s357
      %s359 = sphi 0, %s357
      %s360 = sphi 0, %s359
      %s374 = sphi 0, %s360
      %s378 = sphi 0, %s378
      %s380 = sphi 0, %s378
      %s381 = sphi 0, %s380
      %s395 = sphi 0, %s381
      %s401 = sphi 0, %s403
      %s404 = sphi 0, %s401
      %s405 = sphi 0, %s404
      %s421 = sphi 0, %s405
    $region4: #{tpu_custom_call.1} parent=1 // loop_header_branch
      %32 = sbr.rel (%p30) target = $region8
    $region5: #{tpu_custom_call.1} parent=1 // loop_body
      %s34 = ssub.s32 %s29, 1
      %s35 = ssub.s32 %s29, 2
      %s36 = sadd.s32 %s29, 1
      %s37 = ssub.s32 %s29, %s36
      %p38 = scmp.eq.s32.totalorder %s37, 0
      %s40 = sadd.s32 %s39, 1
      %s41 = scalar_select %p38, %s39, %s40
      %p44 = pneg %p38
      %p45 = scmp.eq.s32.totalorder %s29, 1
      %p46 = por %p44, %p45
      %p47 = scmp.ne.s32.totalorder %s39, %s42
      %p48 = scmp.eq.s32.totalorder %s29, 0
      %p49 = por %p47, %p48
      %p50 = scmp.ne.s32.totalorder %s39, %s42
      %p51 = scmp.eq.s32.totalorder %s34, 1
      %p52 = por %p50, %p51
      %p53 = scmp.ne.s32.totalorder %s42, %s43
      %p54 = scmp.eq.s32.totalorder %s34, 0
      %p55 = por %p53, %p54
      %p56 = scmp.ne.s32.totalorder %s42, %s43
      %p57 = scmp.eq.s32.totalorder %s35, 1
      %p58 = por %p56, %p57
      %p60 = scmp.ne.s32.totalorder %s43, %s59
      %p61 = scmp.eq.s32.totalorder %s35, 0
      %p62 = por %p60, %p61
      %s64 = sadd.s32 %s63, 1
      %p67 = scmp.eq.s32.totalorder %s29, 1
      %p68 = scmp.ne.s32.totalorder %s63, %s65
      %p69 = scmp.eq.s32.totalorder %s29, 0
      %p70 = por %p68, %p69
      %p71 = scmp.ne.s32.totalorder %s63, %s65
      %p72 = scmp.eq.s32.totalorder %s34, 1
      %p73 = por %p71, %p72
      %p74 = scmp.ne.s32.totalorder %s65, %s66
      %p75 = scmp.eq.s32.totalorder %s34, 0
      %p76 = por %p74, %p75
      %p77 = scmp.ne.s32.totalorder %s65, %s66
      %p78 = scmp.eq.s32.totalorder %s35, 1
      %p79 = por %p77, %p78
      %p81 = scmp.ne.s32.totalorder %s66, %s80
      %p82 = scmp.eq.s32.totalorder %s35, 0
      %p83 = por %p81, %p82
      %s85 = sadd.s32 %s84, 1
      %p88 = scmp.eq.s32.totalorder %s29, 1
      %p89 = scmp.ne.s32.totalorder %s84, %s86
      %p90 = scmp.eq.s32.totalorder %s29, 0
      %p91 = por %p89, %p90
      %p92 = scmp.ne.s32.totalorder %s84, %s86
      %p93 = scmp.eq.s32.totalorder %s34, 1
      %p94 = por %p92, %p93
      %p95 = scmp.ne.s32.totalorder %s86, %s87
      %p96 = scmp.eq.s32.totalorder %s34, 0
      %p97 = por %p95, %p96
      %p98 = scmp.ne.s32.totalorder %s86, %s87
      %p99 = scmp.eq.s32.totalorder %s35, 1
      %p100 = por %p98, %p99
      %p102 = scmp.ne.s32.totalorder %s87, %s101
      %p103 = scmp.eq.s32.totalorder %s35, 0
      %p104 = por %p102, %p103
      %s106 = sadd.s32 %s105, 1
      %p109 = scmp.eq.s32.totalorder %s29, 1
      %p110 = scmp.ne.s32.totalorder %s105, %s107
      %p111 = scmp.eq.s32.totalorder %s29, 0
      %p112 = por %p110, %p111
      %p113 = scmp.ne.s32.totalorder %s105, %s107
      %p114 = scmp.eq.s32.totalorder %s34, 1
      %p115 = por %p113, %p114
      %p116 = scmp.ne.s32.totalorder %s107, %s108
      %p117 = scmp.eq.s32.totalorder %s34, 0
      %p118 = por %p116, %p117
      %p119 = scmp.ne.s32.totalorder %s107, %s108
      %p120 = scmp.eq.s32.totalorder %s35, 1
      %p121 = por %p119, %p120
      %p123 = scmp.ne.s32.totalorder %s108, %s122
      %p124 = scmp.eq.s32.totalorder %s35, 0
      %p125 = por %p123, %p124
      %s127 = sadd.s32 %s126, 1
      %p130 = scmp.eq.s32.totalorder %s29, 1
      %p131 = scmp.ne.s32.totalorder %s126, %s128
      %p132 = scmp.eq.s32.totalorder %s29, 0
      %p133 = por %p131, %p132
      %p134 = scmp.ne.s32.totalorder %s126, %s128
      %p135 = scmp.eq.s32.totalorder %s34, 1
      %p136 = por %p134, %p135
      %p137 = scmp.ne.s32.totalorder %s128, %s129
      %p138 = scmp.eq.s32.totalorder %s34, 0
      %p139 = por %p137, %p138
      %p140 = scmp.ne.s32.totalorder %s128, %s129
      %p141 = scmp.eq.s32.totalorder %s35, 1
      %p142 = por %p140, %p141
      %p144 = scmp.ne.s32.totalorder %s129, %s143
      %p145 = scmp.eq.s32.totalorder %s35, 0
      %p146 = por %p144, %p145
      %s148 = sadd.s32 %s147, 1
      %p151 = scmp.eq.s32.totalorder %s29, 1
      %p152 = scmp.ne.s32.totalorder %s147, %s149
      %p153 = scmp.eq.s32.totalorder %s29, 0
      %p154 = por %p152, %p153
      %p155 = scmp.ne.s32.totalorder %s147, %s149
      %p156 = scmp.eq.s32.totalorder %s34, 1
      %p157 = por %p155, %p156
      %p158 = scmp.ne.s32.totalorder %s149, %s150
      %p159 = scmp.eq.s32.totalorder %s34, 0
      %p160 = por %p158, %p159
      %p161 = scmp.ne.s32.totalorder %s149, %s150
      %p162 = scmp.eq.s32.totalorder %s35, 1
      %p163 = por %p161, %p162
      %p165 = scmp.ne.s32.totalorder %s150, %s164
      %p166 = scmp.eq.s32.totalorder %s35, 0
      %p167 = por %p165, %p166
      %s169 = sadd.s32 %s168, 1
      %p172 = scmp.eq.s32.totalorder %s29, 1
      %p173 = scmp.ne.s32.totalorder %s168, %s170
      %p174 = scmp.eq.s32.totalorder %s29, 0
      %p175 = por %p173, %p174
      %p176 = scmp.ne.s32.totalorder %s168, %s170
      %p177 = scmp.eq.s32.totalorder %s34, 1
      %p178 = por %p176, %p177
      %p179 = scmp.ne.s32.totalorder %s170, %s171
      %p180 = scmp.eq.s32.totalorder %s34, 0
      %p181 = por %p179, %p180
      %p182 = scmp.ne.s32.totalorder %s170, %s171
      %p183 = scmp.eq.s32.totalorder %s35, 1
      %p184 = por %p182, %p183
      %p186 = scmp.ne.s32.totalorder %s171, %s185
      %p187 = scmp.eq.s32.totalorder %s35, 0
      %p188 = por %p186, %p187
      %s190 = sadd.s32 %s189, 1
      %p193 = scmp.eq.s32.totalorder %s29, 1
      %p194 = scmp.ne.s32.totalorder %s189, %s191
      %p195 = scmp.eq.s32.totalorder %s29, 0
      %p196 = por %p194, %p195
      %p197 = scmp.ne.s32.totalorder %s189, %s191
      %p198 = scmp.eq.s32.totalorder %s34, 1
      %p199 = por %p197, %p198
      %p200 = scmp.ne.s32.totalorder %s191, %s192
      %p201 = scmp.eq.s32.totalorder %s34, 0
      %p202 = por %p200, %p201
      %p203 = scmp.ne.s32.totalorder %s191, %s192
      %p204 = scmp.eq.s32.totalorder %s35, 1
      %p205 = por %p203, %p204
      %p207 = scmp.ne.s32.totalorder %s192, %s206
      %p208 = scmp.eq.s32.totalorder %s35, 0
      %p209 = por %p207, %p208
      %s211 = sadd.s32 %s210, 1
      %p214 = scmp.eq.s32.totalorder %s29, 1
      %p215 = scmp.ne.s32.totalorder %s210, %s212
      %p216 = scmp.eq.s32.totalorder %s29, 0
      %p217 = por %p215, %p216
      %p218 = scmp.ne.s32.totalorder %s210, %s212
      %p219 = scmp.eq.s32.totalorder %s34, 1
      %p220 = por %p218, %p219
      %p221 = scmp.ne.s32.totalorder %s212, %s213
      %p222 = scmp.eq.s32.totalorder %s34, 0
      %p223 = por %p221, %p222
      %p224 = scmp.ne.s32.totalorder %s212, %s213
      %p225 = scmp.eq.s32.totalorder %s35, 1
      %p226 = por %p224, %p225
      %p228 = scmp.ne.s32.totalorder %s213, %s227
      %p229 = scmp.eq.s32.totalorder %s35, 0
      %p230 = por %p228, %p229
      %s232 = sadd.s32 %s231, 1
      %p235 = scmp.eq.s32.totalorder %s29, 1
      %p236 = scmp.ne.s32.totalorder %s231, %s233
      %p237 = scmp.eq.s32.totalorder %s29, 0
      %p238 = por %p236, %p237
      %p239 = scmp.ne.s32.totalorder %s231, %s233
      %p240 = scmp.eq.s32.totalorder %s34, 1
      %p241 = por %p239, %p240
      %p242 = scmp.ne.s32.totalorder %s233, %s234
      %p243 = scmp.eq.s32.totalorder %s34, 0
      %p244 = por %p242, %p243
      %p245 = scmp.ne.s32.totalorder %s233, %s234
      %p246 = scmp.eq.s32.totalorder %s35, 1
      %p247 = por %p245, %p246
      %p249 = scmp.ne.s32.totalorder %s234, %s248
      %p250 = scmp.eq.s32.totalorder %s35, 0
      %p251 = por %p249, %p250
      %s253 = sadd.s32 %s252, 1
      %p256 = scmp.eq.s32.totalorder %s29, 1
      %p257 = scmp.ne.s32.totalorder %s252, %s254
      %p258 = scmp.eq.s32.totalorder %s29, 0
      %p259 = por %p257, %p258
      %p260 = scmp.ne.s32.totalorder %s252, %s254
      %p261 = scmp.eq.s32.totalorder %s34, 1
      %p262 = por %p260, %p261
      %p263 = scmp.ne.s32.totalorder %s254, %s255
      %p264 = scmp.eq.s32.totalorder %s34, 0
      %p265 = por %p263, %p264
      %p266 = scmp.ne.s32.totalorder %s254, %s255
      %p267 = scmp.eq.s32.totalorder %s35, 1
      %p268 = por %p266, %p267
      %p270 = scmp.ne.s32.totalorder %s255, %s269
      %p271 = scmp.eq.s32.totalorder %s35, 0
      %p272 = por %p270, %p271
      %s274 = sadd.s32 %s273, 1
      %p277 = scmp.eq.s32.totalorder %s29, 1
      %p278 = scmp.ne.s32.totalorder %s273, %s275
      %p279 = scmp.eq.s32.totalorder %s29, 0
      %p280 = por %p278, %p279
      %p281 = scmp.ne.s32.totalorder %s273, %s275
      %p282 = scmp.eq.s32.totalorder %s34, 1
      %p283 = por %p281, %p282
      %p284 = scmp.ne.s32.totalorder %s275, %s276
      %p285 = scmp.eq.s32.totalorder %s34, 0
      %p286 = por %p284, %p285
      %p287 = scmp.ne.s32.totalorder %s275, %s276
      %p288 = scmp.eq.s32.totalorder %s35, 1
      %p289 = por %p287, %p288
      %p291 = scmp.ne.s32.totalorder %s276, %s290
      %p292 = scmp.eq.s32.totalorder %s35, 0
      %p293 = por %p291, %p292
      %s295 = sadd.s32 %s294, 1
      %p298 = scmp.eq.s32.totalorder %s29, 1
      %p299 = scmp.ne.s32.totalorder %s294, %s296
      %p300 = scmp.eq.s32.totalorder %s29, 0
      %p301 = por %p299, %p300
      %p302 = scmp.ne.s32.totalorder %s294, %s296
      %p303 = scmp.eq.s32.totalorder %s34, 1
      %p304 = por %p302, %p303
      %p305 = scmp.ne.s32.totalorder %s296, %s297
      %p306 = scmp.eq.s32.totalorder %s34, 0
      %p307 = por %p305, %p306
      %p308 = scmp.ne.s32.totalorder %s296, %s297
      %p309 = scmp.eq.s32.totalorder %s35, 1
      %p310 = por %p308, %p309
      %p312 = scmp.ne.s32.totalorder %s297, %s311
      %p313 = scmp.eq.s32.totalorder %s35, 0
      %p314 = por %p312, %p313
      %s316 = sadd.s32 %s315, 1
      %p319 = scmp.eq.s32.totalorder %s29, 1
      %p320 = scmp.ne.s32.totalorder %s315, %s317
      %p321 = scmp.eq.s32.totalorder %s29, 0
      %p322 = por %p320, %p321
      %p323 = scmp.ne.s32.totalorder %s315, %s317
      %p324 = scmp.eq.s32.totalorder %s34, 1
      %p325 = por %p323, %p324
      %p326 = scmp.ne.s32.totalorder %s317, %s318
      %p327 = scmp.eq.s32.totalorder %s34, 0
      %p328 = por %p326, %p327
      %p329 = scmp.ne.s32.totalorder %s317, %s318
      %p330 = scmp.eq.s32.totalorder %s35, 1
      %p331 = por %p329, %p330
      %p333 = scmp.ne.s32.totalorder %s318, %s332
      %p334 = scmp.eq.s32.totalorder %s35, 0
      %p335 = por %p333, %p334
      %s337 = sadd.s32 %s336, 1
      %p340 = scmp.eq.s32.totalorder %s29, 1
      %p341 = scmp.ne.s32.totalorder %s336, %s338
      %p342 = scmp.eq.s32.totalorder %s29, 0
      %p343 = por %p341, %p342
      %p344 = scmp.ne.s32.totalorder %s336, %s338
      %p345 = scmp.eq.s32.totalorder %s34, 1
      %p346 = por %p344, %p345
      %p347 = scmp.ne.s32.totalorder %s338, %s339
      %p348 = scmp.eq.s32.totalorder %s34, 0
      %p349 = por %p347, %p348
      %p350 = scmp.ne.s32.totalorder %s338, %s339
      %p351 = scmp.eq.s32.totalorder %s35, 1
      %p352 = por %p350, %p351
      %p354 = scmp.ne.s32.totalorder %s339, %s353
      %p355 = scmp.eq.s32.totalorder %s35, 0
      %p356 = por %p354, %p355
      %s358 = sadd.s32 %s357, 1
      %p361 = scmp.eq.s32.totalorder %s29, 1
      %p362 = scmp.ne.s32.totalorder %s357, %s359
      %p363 = scmp.eq.s32.totalorder %s29, 0
      %p364 = por %p362, %p363
      %p365 = scmp.ne.s32.totalorder %s357, %s359
      %p366 = scmp.eq.s32.totalorder %s34, 1
      %p367 = por %p365, %p366
      %p368 = scmp.ne.s32.totalorder %s359, %s360
      %p369 = scmp.eq.s32.totalorder %s34, 0
      %p370 = por %p368, %p369
      %p371 = scmp.ne.s32.totalorder %s359, %s360
      %p372 = scmp.eq.s32.totalorder %s35, 1
      %p373 = por %p371, %p372
      %p375 = scmp.ne.s32.totalorder %s360, %s374
      %p376 = scmp.eq.s32.totalorder %s35, 0
      %p377 = por %p375, %p376
      %s379 = sadd.s32 %s378, 1
      %p382 = scmp.eq.s32.totalorder %s29, 1
      %p383 = scmp.ne.s32.totalorder %s378, %s380
      %p384 = scmp.eq.s32.totalorder %s29, 0
      %p385 = por %p383, %p384
      %p386 = scmp.ne.s32.totalorder %s378, %s380
      %p387 = scmp.eq.s32.totalorder %s34, 1
      %p388 = por %p386, %p387
      %p389 = scmp.ne.s32.totalorder %s380, %s381
      %p390 = scmp.eq.s32.totalorder %s34, 0
      %p391 = por %p389, %p390
      %p392 = scmp.ne.s32.totalorder %s380, %s381
      %p393 = scmp.eq.s32.totalorder %s35, 1
      %p394 = por %p392, %p393
      %p396 = scmp.ne.s32.totalorder %s381, %s395
      %p397 = scmp.eq.s32.totalorder %s35, 0
      %p398 = por %p396, %p397
      %s399 = ssub.s32 %s29, %s36
      %p400 = scmp.eq.s32.totalorder %s399, 0
      %s402 = sadd.s32 %s401, 1
      %s403 = scalar_select %p400, %s401, %s402
      %p406 = pneg %p400
      %p407 = scmp.eq.s32.totalorder %s29, 1
      %p408 = por %p406, %p407
      %p409 = scmp.ne.s32.totalorder %s401, %s404
      %p410 = scmp.eq.s32.totalorder %s29, 0
      %p411 = por %p409, %p410
      %p412 = scmp.ne.s32.totalorder %s401, %s404
      %p413 = scmp.eq.s32.totalorder %s34, 1
      %p414 = por %p412, %p413
      %p415 = scmp.ne.s32.totalorder %s404, %s405
      %p416 = scmp.eq.s32.totalorder %s34, 0
      %p417 = por %p415, %p416
      %p418 = scmp.ne.s32.totalorder %s404, %s405
      %p419 = scmp.eq.s32.totalorder %s35, 1
      %p420 = por %p418, %p419
      %p422 = scmp.ne.s32.totalorder %s405, %s421
      %p423 = scmp.eq.s32.totalorder %s35, 0
      %p424 = por %p422, %p423
      %p425 = scmp.le.s32.totalorder 1, %s29
      %p426 = scmp.lt.s32.totalorder %s29, 3
      %p427 = pnand %p425, %p426
      %p428 = pneg %p427
      // Predicated region
      $region9: #{tpu_custom_call.1} parent=5 // pred_check
        _
      $region10: #{tpu_custom_call.1} parent=5 // pred_check_branch
        %430 = sbr.rel (%p427) target = $region12
      $region11: #{tpu_custom_call.1} parent=5 // pred_region
        %s431 = ssub.s32 %s29, 1
        // Predicated region
        $region13: #{tpu_custom_call.1} parent=11 // pred_check
          %p432 = pneg %p76
        $region14: #{tpu_custom_call.1} parent=11 // pred_check_branch
          %434 = sbr.rel (%p432) target = $region16
        $region15: #{tpu_custom_call.1} parent=11 // pred_region
          _
        $region16: #{tpu_custom_call.1} parent=11 // pred_fallthru
          _
        // Predicated region
        $region17: #{tpu_custom_call.1} parent=11 // pred_check
          %p435 = pneg %p97
        $region18: #{tpu_custom_call.1} parent=11 // pred_check_branch
          %437 = sbr.rel (%p435) target = $region20
        $region19: #{tpu_custom_call.1} parent=11 // pred_region
          _
        $region20: #{tpu_custom_call.1} parent=11 // pred_fallthru
          _
        // Predicated region
        $region21: #{tpu_custom_call.1} parent=11 // pred_check
          %p438 = pneg %p118
        $region22: #{tpu_custom_call.1} parent=11 // pred_check_branch
          %440 = sbr.rel (%p438) target = $region24
        $region23: #{tpu_custom_call.1} parent=11 // pred_region
          _
        $region24: #{tpu_custom_call.1} parent=11 // pred_fallthru
          _
        // Predicated region
        $region25: #{tpu_custom_call.1} parent=11 // pred_check
          %p441 = pneg %p139
        $region26: #{tpu_custom_call.1} parent=11 // pred_check_branch
          %443 = sbr.rel (%p441) target = $region28
        $region27: #{tpu_custom_call.1} parent=11 // pred_region
          _
        $region28: #{tpu_custom_call.1} parent=11 // pred_fallthru
          _
        // Predicated region
        $region29: #{tpu_custom_call.1} parent=11 // pred_check
          %p444 = pneg %p160
        $region30: #{tpu_custom_call.1} parent=11 // pred_check_branch
          %446 = sbr.rel (%p444) target = $region32
        $region31: #{tpu_custom_call.1} parent=11 // pred_region
          _
        $region32: #{tpu_custom_call.1} parent=11 // pred_fallthru
          _
        // Predicated region
        $region33: #{tpu_custom_call.1} parent=11 // pred_check
          %p447 = pneg %p181
        $region34: #{tpu_custom_call.1} parent=11 // pred_check_branch
          %449 = sbr.rel (%p447) target = $region36
        $region35: #{tpu_custom_call.1} parent=11 // pred_region
          _
        $region36: #{tpu_custom_call.1} parent=11 // pred_fallthru
          _
        // Predicated region
        $region37: #{tpu_custom_call.1} parent=11 // pred_check
          %p450 = pneg %p202
        $region38: #{tpu_custom_call.1} parent=11 // pred_check_branch
          %452 = sbr.rel (%p450) target = $region40
        $region39: #{tpu_custom_call.1} parent=11 // pred_region
          _
        $region40: #{tpu_custom_call.1} parent=11 // pred_fallthru
          _
        // Predicated region
        $region41: #{tpu_custom_call.1} parent=11 // pred_check
          %p453 = pneg %p223
        $region42: #{tpu_custom_call.1} parent=11 // pred_check_branch
          %455 = sbr.rel (%p453) target = $region44
        $region43: #{tpu_custom_call.1} parent=11 // pred_region
          _
        $region44: #{tpu_custom_call.1} parent=11 // pred_fallthru
          _
        // Predicated region
        $region45: #{tpu_custom_call.1} parent=11 // pred_check
          %p456 = pneg %p244
        $region46: #{tpu_custom_call.1} parent=11 // pred_check_branch
          %458 = sbr.rel (%p456) target = $region48
        $region47: #{tpu_custom_call.1} parent=11 // pred_region
          _
        $region48: #{tpu_custom_call.1} parent=11 // pred_fallthru
          _
        // Predicated region
        $region49: #{tpu_custom_call.1} parent=11 // pred_check
          %p459 = pneg %p265
        $region50: #{tpu_custom_call.1} parent=11 // pred_check_branch
          %461 = sbr.rel (%p459) target = $region52
        $region51: #{tpu_custom_call.1} parent=11 // pred_region
          _
        $region52: #{tpu_custom_call.1} parent=11 // pred_fallthru
          _
        // Predicated region
        $region53: #{tpu_custom_call.1} parent=11 // pred_check
          %p462 = pneg %p286
        $region54: #{tpu_custom_call.1} parent=11 // pred_check_branch
          %464 = sbr.rel (%p462) target = $region56
        $region55: #{tpu_custom_call.1} parent=11 // pred_region
          _
        $region56: #{tpu_custom_call.1} parent=11 // pred_fallthru
          _
        // Predicated region
        $region57: #{tpu_custom_call.1} parent=11 // pred_check
          %p465 = pneg %p307
        $region58: #{tpu_custom_call.1} parent=11 // pred_check_branch
          %467 = sbr.rel (%p465) target = $region60
        $region59: #{tpu_custom_call.1} parent=11 // pred_region
          _
        $region60: #{tpu_custom_call.1} parent=11 // pred_fallthru
          _
        // Predicated region
        $region61: #{tpu_custom_call.1} parent=11 // pred_check
          %p468 = pneg %p328
        $region62: #{tpu_custom_call.1} parent=11 // pred_check_branch
          %470 = sbr.rel (%p468) target = $region64
        $region63: #{tpu_custom_call.1} parent=11 // pred_region
          _
        $region64: #{tpu_custom_call.1} parent=11 // pred_fallthru
          _
        // Predicated region
        $region65: #{tpu_custom_call.1} parent=11 // pred_check
          %p471 = pneg %p349
        $region66: #{tpu_custom_call.1} parent=11 // pred_check_branch
          %473 = sbr.rel (%p471) target = $region68
        $region67: #{tpu_custom_call.1} parent=11 // pred_region
          _
        $region68: #{tpu_custom_call.1} parent=11 // pred_fallthru
          _
        // Predicated region
        $region69: #{tpu_custom_call.1} parent=11 // pred_check
          %p474 = pneg %p370
        $region70: #{tpu_custom_call.1} parent=11 // pred_check_branch
          %476 = sbr.rel (%p474) target = $region72
        $region71: #{tpu_custom_call.1} parent=11 // pred_region
          _
        $region72: #{tpu_custom_call.1} parent=11 // pred_fallthru
          _
        // Predicated region
        $region73: #{tpu_custom_call.1} parent=11 // pred_check
          %p477 = pneg %p391
        $region74: #{tpu_custom_call.1} parent=11 // pred_check_branch
          %479 = sbr.rel (%p477) target = $region76
        $region75: #{tpu_custom_call.1} parent=11 // pred_region
          _
        $region76: #{tpu_custom_call.1} parent=11 // pred_fallthru
          _
      $region12: #{tpu_custom_call.1} parent=5 // pred_fallthru
        _
      %p480 = scmp.lt.s32.totalorder %s29, 2
      // Predicated region
      $region77: #{tpu_custom_call.1} parent=5 // pred_check
        %p481 = pneg %p480
      $region78: #{tpu_custom_call.1} parent=5 // pred_check_branch
        %483 = sbr.rel (%p481) target = $region80
      $region79: #{tpu_custom_call.1} parent=5 // pred_region
        // Predicated region
        $region81: #{tpu_custom_call.1} parent=79 // pred_check
          %p484 = pneg %p49
        $region82: #{tpu_custom_call.1} parent=79 // pred_check_branch
          %486 = sbr.rel (%p484) target = $region84
        $region83: #{tpu_custom_call.1} parent=79 // pred_region
          %s487 = sand.u32 %s39, 1
          %s488 = scalar_lea.sflag [#allocation3], %s487
          %s489 = sand.u32 %s39, 1
          %s490 = smul.addr %s489, 8
          %s491 = scalar_lea.vmem [#allocation2], %s490
          %s493 = ssub.s32 128, 128
          %494 = vsyncadd %s488, %s493
          %s495 = smul.addr %s29, 128
          %s496 = scalar_lea.hbm %s0, %s495
          %s498 = sshll.u32 %s491, 4
          %s499 = int_to_ptr.vmem [resolvable:$true] %s498
          %501 = dma.hbm_to_vmem [thread:$0]  %s496, 128, %s499, %s488
        $region84: #{tpu_custom_call.1} parent=79 // pred_fallthru
          _
      $region80: #{tpu_custom_call.1} parent=5 // pred_fallthru
        _
      %p502 = scmp.le.s32.totalorder 1, %s29
      %p503 = scmp.lt.s32.totalorder %s29, 3
      %p504 = pnand %p502, %p503
      %p505 = pneg %p504
      // Predicated region
      $region85: #{tpu_custom_call.1} parent=5 // pred_check
        _
      $region86: #{tpu_custom_call.1} parent=5 // pred_check_branch
        %507 = sbr.rel (%p504) target = $region88
      $region87: #{tpu_custom_call.1} parent=5 // pred_region
        %s508 = ssub.s32 %s29, 1
        %s509 = sand.u32 %s42, 1
        %s510 = scalar_lea.sflag [#allocation3], %s509
        %s511 = sand.u32 %s42, 1
        %s512 = smul.addr %s511, 8
        %s513 = scalar_lea.vmem [#allocation2], %s512
        // Predicated region
        $region89: #{tpu_custom_call.1} parent=87 // pred_check
          %p514 = pneg %p55
        $region90: #{tpu_custom_call.1} parent=87 // pred_check_branch
          %516 = sbr.rel (%p514) target = $region92
        $region91: #{tpu_custom_call.1} parent=87 // pred_region
          %517 = dma.done %s510, 128
        $region92: #{tpu_custom_call.1} parent=87 // pred_fallthru
          _
        %s518 = sand.u32 %s42, 1
        %s519 = scalar_lea.sflag [#allocation3], %s518
        %s520 = sand.u32 %s42, 1
        %s521 = smul.addr %s520, 8
        %s522 = scalar_lea.vmem [#allocation2], %s521
        %p523 = pneg %p55
        %p524 = pneg %p52
        %p525 = pneg %p76
        %p526 = pneg %p73
        %p527 = pneg %p97
        %p528 = pneg %p94
        %p529 = pneg %p118
        %p530 = pneg %p115
        %p531 = pneg %p139
        %p532 = pneg %p136
        %p533 = pneg %p160
        %p534 = pneg %p157
        %p535 = pneg %p181
        %p536 = pneg %p178
        %p537 = pneg %p202
        %p538 = pneg %p199
        %p539 = pneg %p223
        %p540 = pneg %p220
        %p541 = pneg %p244
        %p542 = pneg %p241
        %p543 = pneg %p265
        %p544 = pneg %p262
        %p545 = pneg %p286
        %p546 = pneg %p283
        %p547 = pneg %p307
        %p548 = pneg %p304
        %p549 = pneg %p328
        %p550 = pneg %p325
        %p551 = pneg %p349
        %p552 = pneg %p346
        %p553 = pneg %p370
        %p554 = pneg %p367
        %p555 = pneg %p391
        %p556 = pneg %p388
        %p557 = pneg %p417
        %p558 = pneg %p414
        %s559 = sand.u32 %s404, 1
        %s560 = scalar_lea.sflag [#allocation4], %s559
        %s561 = sand.u32 %s404, 1
        %s562 = smul.addr %s561, 8
        %s563 = scalar_lea.vmem [#allocation5], %s562
        %v564 = vld [vmem:[%s513] sm:$0xff]
        %v565 = vld [vmem:[%s1] sm:$0xff]
        %v566 = vld [vmem:[%s1 + $0x8] sm:$0xff]
        %v567 = vld [vmem:[%s1 + $0x10] sm:$0xff]
        %v568 = vld [vmem:[%s1 + $0x18] sm:$0xff]
        %v569 = vld [vmem:[%s2] sm:$0x1]
        %v571 = vlaneseq
        %v572 = vshrl.u32 %v571, 7
        %v573 = vsub.s32 0, %v572
        %v574 = vrot.slane %v569, %v573
        %vm576 = vcmask 261120
        %v578 = vsel %vm576, %v564, 0
        %580 = vmatprep.subr.mxu0 0.0
        %581 = vmatpush1.msra.mxu0 %v565
        %582 = vmatprep.subr.mxu0 0.0
        %583 = vmatpush1.msra.mxu0 %v566
        %584 = vmatprep.subr.mxu0 0.0
        %585 = vmatpush1.msra.mxu0 %v567
        %586 = vmatprep.subr.mxu0 0.0
        %587 = vmatpush1.msra.mxu0 %v568
        %588 = vmatprep.subr.mxu0 0.0
        %589 = vmatpush1.msra.mxu0 0.0
        %590 = vmatprep.subr.mxu0 0.0
        %591 = vmatpush1.msra.mxu0 0.0
        %592 = vmatprep.subr.mxu0 0.0
        %593 = vmatpush1.msra.mxu0 0.0
        %594 = vmatprep.subr.mxu0 0.0
        %595 = vmatpush1.msra.mxu0 0.0
        %596 = vmatprep.subr.mxu0 0.0
        %597 = vmatpush1.msra.mxu0 0.0
        %598 = vmatprep.subr.mxu0 0.0
        %599 = vmatpush1.msra.mxu0 0.0
        %600 = vmatprep.subr.mxu0 0.0
        %601 = vmatpush1.msra.mxu0 0.0
        %602 = vmatprep.subr.mxu0 0.0
        %603 = vmatpush1.msra.mxu0 0.0
        %604 = vmatprep.subr.mxu0 0.0
        %605 = vmatpush1.msra.mxu0 0.0
        %606 = vmatprep.subr.mxu0 0.0
        %607 = vmatpush1.msra.mxu0 0.0
        %608 = vmatprep.subr.mxu0 0.0
        %609 = vmatpush1.msra.mxu0 0.0
        %610 = vmatprep.subr.mxu0 0.0
        %611 = vmatpush1.msra.mxu0 0.0
        %612 = vmatprep.subr.mxu0 0.0
        %613 = vmatpush1.msra.mxu0 0.0
        %614 = vmatprep.subr.mxu0 0.0
        %615 = vmatpush1.msra.mxu0 0.0
        %616 = vmatprep.subr.mxu0 0.0
        %617 = vmatpush1.msra.mxu0 0.0
        %618 = vmatprep.subr.mxu0 0.0
        %619 = vmatpush1.msra.mxu0 0.0
        %620 = vmatprep.subr.mxu0 0.0
        %621 = vmatpush1.msra.mxu0 0.0
        %622 = vmatprep.subr.mxu0 0.0
        %623 = vmatpush1.msra.mxu0 0.0
        %624 = vmatprep.subr.mxu0 0.0
        %625 = vmatpush1.msra.mxu0 0.0
        %626 = vmatprep.subr.mxu0 0.0
        %627 = vmatpush1.msra.mxu0 0.0
        %628 = vmatprep.subr.mxu0 0.0
        %629 = vmatpush1.msra.mxu0 0.0
        %630 = vmatprep.subr.mxu0 0.0
        %631 = vmatpush1.msra.mxu0 0.0
        %632 = vmatprep.subr.mxu0 0.0
        %633 = vmatpush1.msra.mxu0 0.0
        %634 = vmatprep.subr.mxu0 0.0
        %635 = vmatpush1.msra.mxu0 0.0
        %636 = vmatprep.subr.mxu0 0.0
        %637 = vmatpush1.msra.mxu0 0.0
        %638 = vmatprep.subr.mxu0 0.0
        %639 = vmatpush1.msra.mxu0 0.0
        %640 = vmatprep.subr.mxu0 0.0
        %641 = vmatpush1.msra.mxu0 0.0
        %642 = vmatprep.subr.mxu0 0.0
        %643 = vmatpush1.msra.mxu0 0.0
        %644 = vmatprep.mubr.f32.mxu0 0.0
        %645 = vmatmul.mubr.f32.gmra.mrb[0].mxu0 %v578
        %v646 = vpop.f32.mrb[0].mxu0
        %v647 = vadd.f32 %v574, %v646
        %v648 = vpop.f32.mrb[0].mxu0
        %649 = vdwg.mxu0
        %v650 = vld [vmem:[%s3] sm:$0xff]
        %v651 = vld [vmem:[%s3 + $0x8] sm:$0xff]
        %v652 = vld [vmem:[%s3 + $0x10] sm:$0xff]
        %v653 = vld [vmem:[%s3 + $0x18] sm:$0xff]
        %v654 = vld [vmem:[%s4] sm:$0x1]
        %v656 = vlaneseq
        %v657 = vshrl.u32 %v656, 7
        %v658 = vsub.s32 0, %v657
        %v659 = vrot.slane %v654, %v658
        %661 = vmatprep.subr.mxu0 0.0
        %662 = vmatpush1.msra.mxu0 %v650
        %663 = vmatprep.subr.mxu0 0.0
        %664 = vmatpush1.msra.mxu0 %v651
        %665 = vmatprep.subr.mxu0 0.0
        %666 = vmatpush1.msra.mxu0 %v652
        %667 = vmatprep.subr.mxu0 0.0
        %668 = vmatpush1.msra.mxu0 %v653
        %669 = vmatprep.subr.mxu0 0.0
        %670 = vmatpush1.msra.mxu0 0.0
        %671 = vmatprep.subr.mxu0 0.0
        %672 = vmatpush1.msra.mxu0 0.0
        %673 = vmatprep.subr.mxu0 0.0
        %674 = vmatpush1.msra.mxu0 0.0
        %675 = vmatprep.subr.mxu0 0.0
        %676 = vmatpush1.msra.mxu0 0.0
        %677 = vmatprep.subr.mxu0 0.0
        %678 = vmatpush1.msra.mxu0 0.0
        %679 = vmatprep.subr.mxu0 0.0
        %680 = vmatpush1.msra.mxu0 0.0
        %681 = vmatprep.subr.mxu0 0.0
        %682 = vmatpush1.msra.mxu0 0.0
        %683 = vmatprep.subr.mxu0 0.0
        %684 = vmatpush1.msra.mxu0 0.0
        %685 = vmatprep.subr.mxu0 0.0
        %686 = vmatpush1.msra.mxu0 0.0
        %687 = vmatprep.subr.mxu0 0.0
        %688 = vmatpush1.msra.mxu0 0.0
        %689 = vmatprep.subr.mxu0 0.0
        %690 = vmatpush1.msra.mxu0 0.0
        %691 = vmatprep.subr.mxu0 0.0
        %692 = vmatpush1.msra.mxu0 0.0
        %693 = vmatprep.subr.mxu0 0.0
        %694 = vmatpush1.msra.mxu0 0.0
        %695 = vmatprep.subr.mxu0 0.0
        %696 = vmatpush1.msra.mxu0 0.0
        %697 = vmatprep.subr.mxu0 0.0
        %698 = vmatpush1.msra.mxu0 0.0
        %699 = vmatprep.subr.mxu0 0.0
        %700 = vmatpush1.msra.mxu0 0.0
        %701 = vmatprep.subr.mxu0 0.0
        %702 = vmatpush1.msra.mxu0 0.0
        %703 = vmatprep.subr.mxu0 0.0
        %704 = vmatpush1.msra.mxu0 0.0
        %705 = vmatprep.subr.mxu0 0.0
        %706 = vmatpush1.msra.mxu0 0.0
        %707 = vmatprep.subr.mxu0 0.0
        %708 = vmatpush1.msra.mxu0 0.0
        %709 = vmatprep.subr.mxu0 0.0
        %710 = vmatpush1.msra.mxu0 0.0
        %711 = vmatprep.subr.mxu0 0.0
        %712 = vmatpush1.msra.mxu0 0.0
        %713 = vmatprep.subr.mxu0 0.0
        %714 = vmatpush1.msra.mxu0 0.0
        %715 = vmatprep.subr.mxu0 0.0
        %716 = vmatpush1.msra.mxu0 0.0
        %717 = vmatprep.subr.mxu0 0.0
        %718 = vmatpush1.msra.mxu0 0.0
        %719 = vmatprep.subr.mxu0 0.0
        %720 = vmatpush1.msra.mxu0 0.0
        %721 = vmatprep.subr.mxu0 0.0
        %722 = vmatpush1.msra.mxu0 0.0
        %723 = vmatprep.subr.mxu0 0.0
        %724 = vmatpush1.msra.mxu0 0.0
        %725 = vmatprep.mubr.f32.mxu0 0.0
        %726 = vmatmul.mubr.f32.gmra.mrb[0].mxu0 %v578
        %v727 = vpop.f32.mrb[0].mxu0
        %v728 = vadd.f32 %v659, %v727
        %v729 = vpop.f32.mrb[0].mxu0
        %730 = vdwg.mxu0
        %v731 = vld [vmem:[%s5] sm:$0xff]
        %v732 = vld [vmem:[%s5 + $0x8] sm:$0xff]
        %v733 = vld [vmem:[%s5 + $0x10] sm:$0xff]
        %v734 = vld [vmem:[%s5 + $0x18] sm:$0xff]
        %v735 = vld [vmem:[%s6] sm:$0x1]
        %v737 = vlaneseq
        %v738 = vshrl.u32 %v737, 7
        %v739 = vsub.s32 0, %v738
        %v740 = vrot.slane %v735, %v739
        %742 = vmatprep.subr.mxu0 0.0
        %743 = vmatpush1.msra.mxu0 %v731
        %744 = vmatprep.subr.mxu0 0.0
        %745 = vmatpush1.msra.mxu0 %v732
        %746 = vmatprep.subr.mxu0 0.0
        %747 = vmatpush1.msra.mxu0 %v733
        %748 = vmatprep.subr.mxu0 0.0
        %749 = vmatpush1.msra.mxu0 %v734
        %750 = vmatprep.subr.mxu0 0.0
        %751 = vmatpush1.msra.mxu0 0.0
        %752 = vmatprep.subr.mxu0 0.0
        %753 = vmatpush1.msra.mxu0 0.0
        %754 = vmatprep.subr.mxu0 0.0
        %755 = vmatpush1.msra.mxu0 0.0
        %756 = vmatprep.subr.mxu0 0.0
        %757 = vmatpush1.msra.mxu0 0.0
        %758 = vmatprep.subr.mxu0 0.0
        %759 = vmatpush1.msra.mxu0 0.0
        %760 = vmatprep.subr.mxu0 0.0
        %761 = vmatpush1.msra.mxu0 0.0
        %762 = vmatprep.subr.mxu0 0.0
        %763 = vmatpush1.msra.mxu0 0.0
        %764 = vmatprep.subr.mxu0 0.0
        %765 = vmatpush1.msra.mxu0 0.0
        %766 = vmatprep.subr.mxu0 0.0
        %767 = vmatpush1.msra.mxu0 0.0
        %768 = vmatprep.subr.mxu0 0.0
        %769 = vmatpush1.msra.mxu0 0.0
        %770 = vmatprep.subr.mxu0 0.0
        %771 = vmatpush1.msra.mxu0 0.0
        %772 = vmatprep.subr.mxu0 0.0
        %773 = vmatpush1.msra.mxu0 0.0
        %774 = vmatprep.subr.mxu0 0.0
        %775 = vmatpush1.msra.mxu0 0.0
        %776 = vmatprep.subr.mxu0 0.0
        %777 = vmatpush1.msra.mxu0 0.0
        %778 = vmatprep.subr.mxu0 0.0
        %779 = vmatpush1.msra.mxu0 0.0
        %780 = vmatprep.subr.mxu0 0.0
        %781 = vmatpush1.msra.mxu0 0.0
        %782 = vmatprep.subr.mxu0 0.0
        %783 = vmatpush1.msra.mxu0 0.0
        %784 = vmatprep.subr.mxu0 0.0
        %785 = vmatpush1.msra.mxu0 0.0
        %786 = vmatprep.subr.mxu0 0.0
        %787 = vmatpush1.msra.mxu0 0.0
        %788 = vmatprep.subr.mxu0 0.0
        %789 = vmatpush1.msra.mxu0 0.0
        %790 = vmatprep.subr.mxu0 0.0
        %791 = vmatpush1.msra.mxu0 0.0
        %792 = vmatprep.subr.mxu0 0.0
        %793 = vmatpush1.msra.mxu0 0.0
        %794 = vmatprep.subr.mxu0 0.0
        %795 = vmatpush1.msra.mxu0 0.0
        %796 = vmatprep.subr.mxu0 0.0
        %797 = vmatpush1.msra.mxu0 0.0
        %798 = vmatprep.subr.mxu0 0.0
        %799 = vmatpush1.msra.mxu0 0.0
        %800 = vmatprep.subr.mxu0 0.0
        %801 = vmatpush1.msra.mxu0 0.0
        %802 = vmatprep.subr.mxu0 0.0
        %803 = vmatpush1.msra.mxu0 0.0
        %804 = vmatprep.subr.mxu0 0.0
        %805 = vmatpush1.msra.mxu0 0.0
        %806 = vmatprep.mubr.f32.mxu0 0.0
        %807 = vmatmul.mubr.f32.gmra.mrb[0].mxu0 %v578
        %v808 = vpop.f32.mrb[0].mxu0
        %v809 = vadd.f32 %v740, %v808
        %v810 = vpop.f32.mrb[0].mxu0
        %811 = vdwg.mxu0
        %v812 = vmul.f32 %v647, 0.35355338
        %814 = vrot.lane.b32.xlu0 %v812, 120
        %v815 = vpop.permute.xlu0 %814
        %816 = vrot.lane.b32.xlu0 %v812, 112
        %v817 = vpop.permute.xlu0 %816
        %818 = vrot.lane.b32.xlu0 %v812, 104
        %v819 = vpop.permute.xlu0 %818
        %821 = vrot.lane.b32.xlu0 %v728, 120
        %v822 = vpop.permute.xlu0 %821
        %824 = vrot.lane.b32.xlu0 %v728, 112
        %v825 = vpop.permute.xlu0 %824
        %827 = vrot.lane.b32.xlu0 %v728, 104
        %v828 = vpop.permute.xlu0 %827
        %831 = vrot.lane.b32.xlu0 %v809, 120
        %v832 = vpop.permute.xlu0 %831
        %834 = vrot.lane.b32.xlu0 %v809, 112
        %v835 = vpop.permute.xlu0 %834
        %837 = vrot.lane.b32.xlu0 %v809, 104
        %v838 = vpop.permute.xlu0 %837
        %840 = vxpose.xlu0.b32.start [1/16] %v728, 128
        %841 = vxpose.xlu0.b32.cont [2/16] 0.0, 128
        %842 = vxpose.xlu0.b32.cont [3/16] 0.0, 128
        %843 = vxpose.xlu0.b32.cont [4/16] 0.0, 128
        %844 = vxpose.xlu0.b32.cont [5/16] 0.0, 128
        %845 = vxpose.xlu0.b32.cont [6/16] 0.0, 128
        %846 = vxpose.xlu0.b32.cont [7/16] 0.0, 128
        %847 = vxpose.xlu0.b32.cont [8/16] 0.0, 128
        %848 = vxpose.xlu0.b32.cont [9/16] 0.0, 128
        %849 = vxpose.xlu0.b32.cont [10/16] 0.0, 128
        %850 = vxpose.xlu0.b32.cont [11/16] 0.0, 128
        %851 = vxpose.xlu0.b32.cont [12/16] 0.0, 128
        %852 = vxpose.xlu0.b32.cont [13/16] 0.0, 128
        %853 = vxpose.xlu0.b32.cont [14/16] 0.0, 128
        %854 = vxpose.xlu0.b32.cont [15/16] 0.0, 128
        %855 = vxpose.xlu0.b32.end [16/16] 0.0, 128
        %v856 = vpop.trf.xlu0
        %v857 = vpop.trf.xlu0
        %v858 = vpop.trf.xlu0
        %v859 = vpop.trf.xlu0
        %v860 = vpop.trf.xlu0
        %v861 = vpop.trf.xlu0
        %v862 = vpop.trf.xlu0
        %v863 = vpop.trf.xlu0
        %v864 = vpop.trf.xlu0
        %v865 = vpop.trf.xlu0
        %v866 = vpop.trf.xlu0
        %v867 = vpop.trf.xlu0
        %v868 = vpop.trf.xlu0
        %v869 = vpop.trf.xlu0
        %v870 = vpop.trf.xlu0
        %v871 = vpop.trf.xlu0
        %872 = vxpose.xlu0.b32.start [1/16] %v822, 128
        %873 = vxpose.xlu0.b32.cont [2/16] 0.0, 128
        %874 = vxpose.xlu0.b32.cont [3/16] 0.0, 128
        %875 = vxpose.xlu0.b32.cont [4/16] 0.0, 128
        %876 = vxpose.xlu0.b32.cont [5/16] 0.0, 128
        %877 = vxpose.xlu0.b32.cont [6/16] 0.0, 128
        %878 = vxpose.xlu0.b32.cont [7/16] 0.0, 128
        %879 = vxpose.xlu0.b32.cont [8/16] 0.0, 128
        %880 = vxpose.xlu0.b32.cont [9/16] 0.0, 128
        %881 = vxpose.xlu0.b32.cont [10/16] 0.0, 128
        %882 = vxpose.xlu0.b32.cont [11/16] 0.0, 128
        %883 = vxpose.xlu0.b32.cont [12/16] 0.0, 128
        %884 = vxpose.xlu0.b32.cont [13/16] 0.0, 128
        %885 = vxpose.xlu0.b32.cont [14/16] 0.0, 128
        %886 = vxpose.xlu0.b32.cont [15/16] 0.0, 128
        %887 = vxpose.xlu0.b32.end [16/16] 0.0, 128
        %v888 = vpop.trf.xlu0
        %v889 = vpop.trf.xlu0
        %v890 = vpop.trf.xlu0
        %v891 = vpop.trf.xlu0
        %v892 = vpop.trf.xlu0
        %v893 = vpop.trf.xlu0
        %v894 = vpop.trf.xlu0
        %v895 = vpop.trf.xlu0
        %v896 = vpop.trf.xlu0
        %v897 = vpop.trf.xlu0
        %v898 = vpop.trf.xlu0
        %v899 = vpop.trf.xlu0
        %v900 = vpop.trf.xlu0
        %v901 = vpop.trf.xlu0
        %v902 = vpop.trf.xlu0
        %v903 = vpop.trf.xlu0
        %904 = vxpose.xlu0.b32.start [1/16] %v825, 128
        %905 = vxpose.xlu0.b32.cont [2/16] 0.0, 128
        %906 = vxpose.xlu0.b32.cont [3/16] 0.0, 128
        %907 = vxpose.xlu0.b32.cont [4/16] 0.0, 128
        %908 = vxpose.xlu0.b32.cont [5/16] 0.0, 128
        %909 = vxpose.xlu0.b32.cont [6/16] 0.0, 128
        %910 = vxpose.xlu0.b32.cont [7/16] 0.0, 128
        %911 = vxpose.xlu0.b32.cont [8/16] 0.0, 128
        %912 = vxpose.xlu0.b32.cont [9/16] 0.0, 128
        %913 = vxpose.xlu0.b32.cont [10/16] 0.0, 128
        %914 = vxpose.xlu0.b32.cont [11/16] 0.0, 128
        %915 = vxpose.xlu0.b32.cont [12/16] 0.0, 128
        %916 = vxpose.xlu0.b32.cont [13/16] 0.0, 128
        %917 = vxpose.xlu0.b32.cont [14/16] 0.0, 128
        %918 = vxpose.xlu0.b32.cont [15/16] 0.0, 128
        %919 = vxpose.xlu0.b32.end [16/16] 0.0, 128
        %v920 = vpop.trf.xlu0
        %v921 = vpop.trf.xlu0
        %v922 = vpop.trf.xlu0
        %v923 = vpop.trf.xlu0
        %v924 = vpop.trf.xlu0
        %v925 = vpop.trf.xlu0
        %v926 = vpop.trf.xlu0
        %v927 = vpop.trf.xlu0
        %v928 = vpop.trf.xlu0
        %v929 = vpop.trf.xlu0
        %v930 = vpop.trf.xlu0
        %v931 = vpop.trf.xlu0
        %v932 = vpop.trf.xlu0
        %v933 = vpop.trf.xlu0
        %v934 = vpop.trf.xlu0
        %v935 = vpop.trf.xlu0
        %936 = vxpose.xlu0.b32.start [1/16] %v828, 128
        %937 = vxpose.xlu0.b32.cont [2/16] 0.0, 128
        %938 = vxpose.xlu0.b32.cont [3/16] 0.0, 128
        %939 = vxpose.xlu0.b32.cont [4/16] 0.0, 128
        %940 = vxpose.xlu0.b32.cont [5/16] 0.0, 128
        %941 = vxpose.xlu0.b32.cont [6/16] 0.0, 128
        %942 = vxpose.xlu0.b32.cont [7/16] 0.0, 128
        %943 = vxpose.xlu0.b32.cont [8/16] 0.0, 128
        %944 = vxpose.xlu0.b32.cont [9/16] 0.0, 128
        %945 = vxpose.xlu0.b32.cont [10/16] 0.0, 128
        %946 = vxpose.xlu0.b32.cont [11/16] 0.0, 128
        %947 = vxpose.xlu0.b32.cont [12/16] 0.0, 128
        %948 = vxpose.xlu0.b32.cont [13/16] 0.0, 128
        %949 = vxpose.xlu0.b32.cont [14/16] 0.0, 128
        %950 = vxpose.xlu0.b32.cont [15/16] 0.0, 128
        %951 = vxpose.xlu0.b32.end [16/16] 0.0, 128
        %v952 = vpop.trf.xlu0
        %v953 = vpop.trf.xlu0
        %v954 = vpop.trf.xlu0
        %v955 = vpop.trf.xlu0
        %v956 = vpop.trf.xlu0
        %v957 = vpop.trf.xlu0
        %v958 = vpop.trf.xlu0
        %v959 = vpop.trf.xlu0
        %v960 = vpop.trf.xlu0
        %v961 = vpop.trf.xlu0
        %v962 = vpop.trf.xlu0
        %v963 = vpop.trf.xlu0
        %v964 = vpop.trf.xlu0
        %v965 = vpop.trf.xlu0
        %v966 = vpop.trf.xlu0
        %v967 = vpop.trf.xlu0
        %vm968 = vcmask 64512
        %v969 = vsel %vm968, %v812, 0
        %971 = vmatprep.subr.mxu0 0.0
        %972 = vmatpush1.msra.mxu0 %v856
        %973 = vmatprep.subr.mxu0 0.0
        %974 = vmatpush1.msra.mxu0 0.0
        %975 = vmatprep.subr.mxu0 0.0
        %976 = vmatpush1.msra.mxu0 0.0
        %977 = vmatprep.subr.mxu0 0.0
        %978 = vmatpush1.msra.mxu0 0.0
        %979 = vmatprep.subr.mxu0 0.0
        %980 = vmatpush1.msra.mxu0 0.0
        %981 = vmatprep.subr.mxu0 0.0
        %982 = vmatpush1.msra.mxu0 0.0
        %983 = vmatprep.subr.mxu0 0.0
        %984 = vmatpush1.msra.mxu0 0.0
        %985 = vmatprep.subr.mxu0 0.0
        %986 = vmatpush1.msra.mxu0 0.0
        %987 = vmatprep.subr.mxu0 0.0
        %988 = vmatpush1.msra.mxu0 0.0
        %989 = vmatprep.subr.mxu0 0.0
        %990 = vmatpush1.msra.mxu0 0.0
        %991 = vmatprep.subr.mxu0 0.0
        %992 = vmatpush1.msra.mxu0 0.0
        %993 = vmatprep.subr.mxu0 0.0
        %994 = vmatpush1.msra.mxu0 0.0
        %995 = vmatprep.subr.mxu0 0.0
        %996 = vmatpush1.msra.mxu0 0.0
        %997 = vmatprep.subr.mxu0 0.0
        %998 = vmatpush1.msra.mxu0 0.0
        %999 = vmatprep.subr.mxu0 0.0
        %1000 = vmatpush1.msra.mxu0 0.0
        %1001 = vmatprep.subr.mxu0 0.0
        %1002 = vmatpush1.msra.mxu0 0.0
        %1003 = vmatprep.subr.mxu0 0.0
        %1004 = vmatpush1.msra.mxu0 0.0
        %1005 = vmatprep.subr.mxu0 0.0
        %1006 = vmatpush1.msra.mxu0 0.0
        %1007 = vmatprep.subr.mxu0 0.0
        %1008 = vmatpush1.msra.mxu0 0.0
        %1009 = vmatprep.subr.mxu0 0.0
        %1010 = vmatpush1.msra.mxu0 0.0
        %1011 = vmatprep.subr.mxu0 0.0
        %1012 = vmatpush1.msra.mxu0 0.0
        %1013 = vmatprep.subr.mxu0 0.0
        %1014 = vmatpush1.msra.mxu0 0.0
        %1015 = vmatprep.subr.mxu0 0.0
        %1016 = vmatpush1.msra.mxu0 0.0
        %1017 = vmatprep.subr.mxu0 0.0
        %1018 = vmatpush1.msra.mxu0 0.0
        %1019 = vmatprep.subr.mxu0 0.0
        %1020 = vmatpush1.msra.mxu0 0.0
        %1021 = vmatprep.subr.mxu0 0.0
        %1022 = vmatpush1.msra.mxu0 0.0
        %1023 = vmatprep.subr.mxu0 0.0
        %1024 = vmatpush1.msra.mxu0 0.0
        %1025 = vmatprep.subr.mxu0 0.0
        %1026 = vmatpush1.msra.mxu0 0.0
        %1027 = vmatprep.subr.mxu0 0.0
        %1028 = vmatpush1.msra.mxu0 0.0
        %1029 = vmatprep.subr.mxu0 0.0
        %1030 = vmatpush1.msra.mxu0 0.0
        %1031 = vmatprep.subr.mxu0 0.0
        %1032 = vmatpush1.msra.mxu0 0.0
        %1033 = vmatprep.subr.mxu0 0.0
        %1034 = vmatpush1.msra.mxu0 0.0
        %1035 = vmatprep.mubr.f32.mxu0 0.0
        %1036 = vmatmul.mubr.f32.gmra.mrb[0].mxu0 %v969
        %v1037 = vpop.f32.mrb[0].mxu0
        %v1038 = vadd.f32 0.0, %v1037
        %v1039 = vpop.f32.mrb[0].mxu0
        %1040 = vdwg.mxu0
        %v1041 = vsel %vm968, %v815, 0
        %1043 = vmatprep.subr.mxu0 0.0
        %1044 = vmatpush1.msra.mxu0 %v888
        %1045 = vmatprep.subr.mxu0 0.0
        %1046 = vmatpush1.msra.mxu0 0.0
        %1047 = vmatprep.subr.mxu0 0.0
        %1048 = vmatpush1.msra.mxu0 0.0
        %1049 = vmatprep.subr.mxu0 0.0
        %1050 = vmatpush1.msra.mxu0 0.0
        %1051 = vmatprep.subr.mxu0 0.0
        %1052 = vmatpush1.msra.mxu0 0.0
        %1053 = vmatprep.subr.mxu0 0.0
        %1054 = vmatpush1.msra.mxu0 0.0
        %1055 = vmatprep.subr.mxu0 0.0
        %1056 = vmatpush1.msra.mxu0 0.0
        %1057 = vmatprep.subr.mxu0 0.0
        %1058 = vmatpush1.msra.mxu0 0.0
        %1059 = vmatprep.subr.mxu0 0.0
        %1060 = vmatpush1.msra.mxu0 0.0
        %1061 = vmatprep.subr.mxu0 0.0
        %1062 = vmatpush1.msra.mxu0 0.0
        %1063 = vmatprep.subr.mxu0 0.0
        %1064 = vmatpush1.msra.mxu0 0.0
        %1065 = vmatprep.subr.mxu0 0.0
        %1066 = vmatpush1.msra.mxu0 0.0
        %1067 = vmatprep.subr.mxu0 0.0
        %1068 = vmatpush1.msra.mxu0 0.0
        %1069 = vmatprep.subr.mxu0 0.0
        %1070 = vmatpush1.msra.mxu0 0.0
        %1071 = vmatprep.subr.mxu0 0.0
        %1072 = vmatpush1.msra.mxu0 0.0
        %1073 = vmatprep.subr.mxu0 0.0
        %1074 = vmatpush1.msra.mxu0 0.0
        %1075 = vmatprep.subr.mxu0 0.0
        %1076 = vmatpush1.msra.mxu0 0.0
        %1077 = vmatprep.subr.mxu0 0.0
        %1078 = vmatpush1.msra.mxu0 0.0
        %1079 = vmatprep.subr.mxu0 0.0
        %1080 = vmatpush1.msra.mxu0 0.0
        %1081 = vmatprep.subr.mxu0 0.0
        %1082 = vmatpush1.msra.mxu0 0.0
        %1083 = vmatprep.subr.mxu0 0.0
        %1084 = vmatpush1.msra.mxu0 0.0
        %1085 = vmatprep.subr.mxu0 0.0
        %1086 = vmatpush1.msra.mxu0 0.0
        %1087 = vmatprep.subr.mxu0 0.0
        %1088 = vmatpush1.msra.mxu0 0.0
        %1089 = vmatprep.subr.mxu0 0.0
        %1090 = vmatpush1.msra.mxu0 0.0
        %1091 = vmatprep.subr.mxu0 0.0
        %1092 = vmatpush1.msra.mxu0 0.0
        %1093 = vmatprep.subr.mxu0 0.0
        %1094 = vmatpush1.msra.mxu0 0.0
        %1095 = vmatprep.subr.mxu0 0.0
        %1096 = vmatpush1.msra.mxu0 0.0
        %1097 = vmatprep.subr.mxu0 0.0
        %1098 = vmatpush1.msra.mxu0 0.0
        %1099 = vmatprep.subr.mxu0 0.0
        %1100 = vmatpush1.msra.mxu0 0.0
        %1101 = vmatprep.subr.mxu0 0.0
        %1102 = vmatpush1.msra.mxu0 0.0
        %1103 = vmatprep.subr.mxu0 0.0
        %1104 = vmatpush1.msra.mxu0 0.0
        %1105 = vmatprep.subr.mxu0 0.0
        %1106 = vmatpush1.msra.mxu0 0.0
        %1107 = vmatprep.mubr.f32.mxu0 0.0
        %1108 = vmatmul.mubr.f32.gmra.mrb[0].mxu0 %v1041
        %v1109 = vpop.f32.mrb[0].mxu0
        %v1110 = vadd.f32 0.0, %v1109
        %v1111 = vpop.f32.mrb[0].mxu0
        %1112 = vdwg.mxu0
        %v1113 = vsel %vm968, %v817, 0
        %1115 = vmatprep.subr.mxu0 0.0
        %1116 = vmatpush1.msra.mxu0 %v920
        %1117 = vmatprep.subr.mxu0 0.0
        %1118 = vmatpush1.msra.mxu0 0.0
        %1119 = vmatprep.subr.mxu0 0.0
        %1120 = vmatpush1.msra.mxu0 0.0
        %1121 = vmatprep.subr.mxu0 0.0
        %1122 = vmatpush1.msra.mxu0 0.0
        %1123 = vmatprep.subr.mxu0 0.0
        %1124 = vmatpush1.msra.mxu0 0.0
        %1125 = vmatprep.subr.mxu0 0.0
        %1126 = vmatpush1.msra.mxu0 0.0
        %1127 = vmatprep.subr.mxu0 0.0
        %1128 = vmatpush1.msra.mxu0 0.0
        %1129 = vmatprep.subr.mxu0 0.0
        %1130 = vmatpush1.msra.mxu0 0.0
        %1131 = vmatprep.subr.mxu0 0.0
        %1132 = vmatpush1.msra.mxu0 0.0
        %1133 = vmatprep.subr.mxu0 0.0
        %1134 = vmatpush1.msra.mxu0 0.0
        %1135 = vmatprep.subr.mxu0 0.0
        %1136 = vmatpush1.msra.mxu0 0.0
        %1137 = vmatprep.subr.mxu0 0.0
        %1138 = vmatpush1.msra.mxu0 0.0
        %1139 = vmatprep.subr.mxu0 0.0
        %1140 = vmatpush1.msra.mxu0 0.0
        %1141 = vmatprep.subr.mxu0 0.0
        %1142 = vmatpush1.msra.mxu0 0.0
        %1143 = vmatprep.subr.mxu0 0.0
        %1144 = vmatpush1.msra.mxu0 0.0
        %1145 = vmatprep.subr.mxu0 0.0
        %1146 = vmatpush1.msra.mxu0 0.0
        %1147 = vmatprep.subr.mxu0 0.0
        %1148 = vmatpush1.msra.mxu0 0.0
        %1149 = vmatprep.subr.mxu0 0.0
        %1150 = vmatpush1.msra.mxu0 0.0
        %1151 = vmatprep.subr.mxu0 0.0
        %1152 = vmatpush1.msra.mxu0 0.0
        %1153 = vmatprep.subr.mxu0 0.0
        %1154 = vmatpush1.msra.mxu0 0.0
        %1155 = vmatprep.subr.mxu0 0.0
        %1156 = vmatpush1.msra.mxu0 0.0
        %1157 = vmatprep.subr.mxu0 0.0
        %1158 = vmatpush1.msra.mxu0 0.0
        %1159 = vmatprep.subr.mxu0 0.0
        %1160 = vmatpush1.msra.mxu0 0.0
        %1161 = vmatprep.subr.mxu0 0.0
        %1162 = vmatpush1.msra.mxu0 0.0
        %1163 = vmatprep.subr.mxu0 0.0
        %1164 = vmatpush1.msra.mxu0 0.0
        %1165 = vmatprep.subr.mxu0 0.0
        %1166 = vmatpush1.msra.mxu0 0.0
        %1167 = vmatprep.subr.mxu0 0.0
        %1168 = vmatpush1.msra.mxu0 0.0
        %1169 = vmatprep.subr.mxu0 0.0
        %1170 = vmatpush1.msra.mxu0 0.0
        %1171 = vmatprep.subr.mxu0 0.0
        %1172 = vmatpush1.msra.mxu0 0.0
        %1173 = vmatprep.subr.mxu0 0.0
        %1174 = vmatpush1.msra.mxu0 0.0
        %1175 = vmatprep.subr.mxu0 0.0
        %1176 = vmatpush1.msra.mxu0 0.0
        %1177 = vmatprep.subr.mxu0 0.0
        %1178 = vmatpush1.msra.mxu0 0.0
        %1179 = vmatprep.mubr.f32.mxu0 0.0
        %1180 = vmatmul.mubr.f32.gmra.mrb[0].mxu0 %v1113
        %v1181 = vpop.f32.mrb[0].mxu0
        %v1182 = vadd.f32 0.0, %v1181
        %v1183 = vpop.f32.mrb[0].mxu0
        %1184 = vdwg.mxu0
        %v1185 = vsel %vm968, %v819, 0
        %1187 = vmatprep.subr.mxu0 0.0
        %1188 = vmatpush1.msra.mxu0 %v952
        %1189 = vmatprep.subr.mxu0 0.0
        %1190 = vmatpush1.msra.mxu0 0.0
        %1191 = vmatprep.subr.mxu0 0.0
        %1192 = vmatpush1.msra.mxu0 0.0
        %1193 = vmatprep.subr.mxu0 0.0
        %1194 = vmatpush1.msra.mxu0 0.0
        %1195 = vmatprep.subr.mxu0 0.0
        %1196 = vmatpush1.msra.mxu0 0.0
        %1197 = vmatprep.subr.mxu0 0.0
        %1198 = vmatpush1.msra.mxu0 0.0
        %1199 = vmatprep.subr.mxu0 0.0
        %1200 = vmatpush1.msra.mxu0 0.0
        %1201 = vmatprep.subr.mxu0 0.0
        %1202 = vmatpush1.msra.mxu0 0.0
        %1203 = vmatprep.subr.mxu0 0.0
        %1204 = vmatpush1.msra.mxu0 0.0
        %1205 = vmatprep.subr.mxu0 0.0
        %1206 = vmatpush1.msra.mxu0 0.0
        %1207 = vmatprep.subr.mxu0 0.0
        %1208 = vmatpush1.msra.mxu0 0.0
        %1209 = vmatprep.subr.mxu0 0.0
        %1210 = vmatpush1.msra.mxu0 0.0
        %1211 = vmatprep.subr.mxu0 0.0
        %1212 = vmatpush1.msra.mxu0 0.0
        %1213 = vmatprep.subr.mxu0 0.0
        %1214 = vmatpush1.msra.mxu0 0.0
        %1215 = vmatprep.subr.mxu0 0.0
        %1216 = vmatpush1.msra.mxu0 0.0
        %1217 = vmatprep.subr.mxu0 0.0
        %1218 = vmatpush1.msra.mxu0 0.0
        %1219 = vmatprep.subr.mxu0 0.0
        %1220 = vmatpush1.msra.mxu0 0.0
        %1221 = vmatprep.subr.mxu0 0.0
        %1222 = vmatpush1.msra.mxu0 0.0
        %1223 = vmatprep.subr.mxu0 0.0
        %1224 = vmatpush1.msra.mxu0 0.0
        %1225 = vmatprep.subr.mxu0 0.0
        %1226 = vmatpush1.msra.mxu0 0.0
        %1227 = vmatprep.subr.mxu0 0.0
        %1228 = vmatpush1.msra.mxu0 0.0
        %1229 = vmatprep.subr.mxu0 0.0
        %1230 = vmatpush1.msra.mxu0 0.0
        %1231 = vmatprep.subr.mxu0 0.0
        %1232 = vmatpush1.msra.mxu0 0.0
        %1233 = vmatprep.subr.mxu0 0.0
        %1234 = vmatpush1.msra.mxu0 0.0
        %1235 = vmatprep.subr.mxu0 0.0
        %1236 = vmatpush1.msra.mxu0 0.0
        %1237 = vmatprep.subr.mxu0 0.0
        %1238 = vmatpush1.msra.mxu0 0.0
        %1239 = vmatprep.subr.mxu0 0.0
        %1240 = vmatpush1.msra.mxu0 0.0
        %1241 = vmatprep.subr.mxu0 0.0
        %1242 = vmatpush1.msra.mxu0 0.0
        %1243 = vmatprep.subr.mxu0 0.0
        %1244 = vmatpush1.msra.mxu0 0.0
        %1245 = vmatprep.subr.mxu0 0.0
        %1246 = vmatpush1.msra.mxu0 0.0
        %1247 = vmatprep.subr.mxu0 0.0
        %1248 = vmatpush1.msra.mxu0 0.0
        %1249 = vmatprep.subr.mxu0 0.0
        %1250 = vmatpush1.msra.mxu0 0.0
        %1251 = vmatprep.mubr.f32.mxu0 0.0
        %1252 = vmatmul.mubr.f32.gmra.mrb[0].mxu0 %v1185
        %v1253 = vpop.f32.mrb[0].mxu0
        %v1254 = vadd.f32 0.0, %v1253
        %v1255 = vpop.f32.mrb[0].mxu0
        %1256 = vdwg.mxu0
        %v1257 = vlaneseq
        %v1258 = vshrl.u32 %v1257, 7
        %v1259 = vlaneseq
        %v1260 = vand.u32 %v1259, 127
        %vm1261 = vcmp.ge.s32.totalorder %v1258, %v1260
        %v1262 = vsel %vm1261, 1, 0
        %vm1263 = vcmp.eq.s32.totalorder %v1262, 1
        %v1264 = vsel %vm1263, %v1038, -1e+20
        %v1265 = vsel %vm1263, %v1110, -1e+20
        %v1266 = vsel %vm1263, %v1182, -1e+20
        %v1267 = vsel %vm1263, %v1254, -1e+20
        %v1268 = vsel %vm968, %v1264, -inf
        %1269 = vmax.xlane.f32.xlu0 %v1268
        %v1270 = vpop.xlane.xlu0 %1269
        %v1271 = vsel %vm968, %v1265, -inf
        %1272 = vmax.xlane.f32.xlu0 %v1271
        %v1273 = vpop.xlane.xlu0 %1272
        %v1274 = vsel %vm968, %v1266, -inf
        %1275 = vmax.xlane.f32.xlu0 %v1274
        %v1276 = vpop.xlane.xlu0 %1275
        %v1277 = vsel %vm968, %v1267, -inf
        %1278 = vmax.xlane.f32.xlu0 %v1277
        %v1279 = vpop.xlane.xlu0 %1278
        %v1280 = vsub.f32 %v1264, %v1270
        %v1281 = vsub.f32 %v1265, %v1273
        %v1282 = vsub.f32 %v1266, %v1276
        %v1283 = vsub.f32 %v1267, %v1279
        %v1284 = vmul.f32 %v1280, 1.442695
        %v1285 = vpow.pop %v1284
        %v1286 = vmul.f32 %v1281, 1.442695
        %v1287 = vpow.pop %v1286
        %v1288 = vmul.f32 %v1282, 1.442695
        %v1289 = vpow.pop %v1288
        %v1290 = vmul.f32 %v1283, 1.442695
        %v1291 = vpow.pop %v1290
        %v1292 = vsel %vm968, %v1285, 0.0
        %1293 = vadd.xlane.f32.xlu0 %v1292
        %v1294 = vpop.xlane.xlu0 %1293
        %v1295 = vsel %vm968, %v1287, 0.0
        %1296 = vadd.xlane.f32.xlu0 %v1295
        %v1297 = vpop.xlane.xlu0 %1296
        %v1298 = vsel %vm968, %v1289, 0.0
        %1299 = vadd.xlane.f32.xlu0 %v1298
        %v1300 = vpop.xlane.xlu0 %1299
        %v1301 = vsel %vm968, %v1291, 0.0
        %1302 = vadd.xlane.f32.xlu0 %v1301
        %v1303 = vpop.xlane.xlu0 %1302
        %v1304 = vrcp.pop %v1294
        %v1305 = vrcp.pop %v1297
        %v1306 = vrcp.pop %v1300
        %v1307 = vrcp.pop %v1303
        %v1308 = vmul.f32 %v1285, %v1304
        %v1309 = vmul.f32 %v1287, %v1305
        %v1310 = vmul.f32 %v1289, %v1306
        %v1311 = vmul.f32 %v1291, %v1307
        %1312 = vxpose.xlu0.b32.start [1/16] %v809, 128
        %1313 = vxpose.xlu0.b32.cont [2/16] 0.0, 128
        %1314 = vxpose.xlu0.b32.cont [3/16] 0.0, 128
        %1315 = vxpose.xlu0.b32.cont [4/16] 0.0, 128
        %1316 = vxpose.xlu0.b32.cont [5/16] 0.0, 128
        %1317 = vxpose.xlu0.b32.cont [6/16] 0.0, 128
        %1318 = vxpose.xlu0.b32.cont [7/16] 0.0, 128
        %1319 = vxpose.xlu0.b32.cont [8/16] 0.0, 128
        %1320 = vxpose.xlu0.b32.cont [9/16] 0.0, 128
        %1321 = vxpose.xlu0.b32.cont [10/16] 0.0, 128
        %1322 = vxpose.xlu0.b32.cont [11/16] 0.0, 128
        %1323 = vxpose.xlu0.b32.cont [12/16] 0.0, 128
        %1324 = vxpose.xlu0.b32.cont [13/16] 0.0, 128
        %1325 = vxpose.xlu0.b32.cont [14/16] 0.0, 128
        %1326 = vxpose.xlu0.b32.cont [15/16] 0.0, 128
        %1327 = vxpose.xlu0.b32.end [16/16] 0.0, 128
        %v1328 = vpop.trf.xlu0
        %v1329 = vpop.trf.xlu0
        %v1330 = vpop.trf.xlu0
        %v1331 = vpop.trf.xlu0
        %v1332 = vpop.trf.xlu0
        %v1333 = vpop.trf.xlu0
        %v1334 = vpop.trf.xlu0
        %v1335 = vpop.trf.xlu0
        %v1336 = vpop.trf.xlu0
        %v1337 = vpop.trf.xlu0
        %v1338 = vpop.trf.xlu0
        %v1339 = vpop.trf.xlu0
        %v1340 = vpop.trf.xlu0
        %v1341 = vpop.trf.xlu0
        %v1342 = vpop.trf.xlu0
        %v1343 = vpop.trf.xlu0
        %1344 = vxpose.xlu0.b32.start [1/16] %v832, 128
        %1345 = vxpose.xlu0.b32.cont [2/16] 0.0, 128
        %1346 = vxpose.xlu0.b32.cont [3/16] 0.0, 128
        %1347 = vxpose.xlu0.b32.cont [4/16] 0.0, 128
        %1348 = vxpose.xlu0.b32.cont [5/16] 0.0, 128
        %1349 = vxpose.xlu0.b32.cont [6/16] 0.0, 128
        %1350 = vxpose.xlu0.b32.cont [7/16] 0.0, 128
        %1351 = vxpose.xlu0.b32.cont [8/16] 0.0, 128
        %1352 = vxpose.xlu0.b32.cont [9/16] 0.0, 128
        %1353 = vxpose.xlu0.b32.cont [10/16] 0.0, 128
        %1354 = vxpose.xlu0.b32.cont [11/16] 0.0, 128
        %1355 = vxpose.xlu0.b32.cont [12/16] 0.0, 128
        %1356 = vxpose.xlu0.b32.cont [13/16] 0.0, 128
        %1357 = vxpose.xlu0.b32.cont [14/16] 0.0, 128
        %1358 = vxpose.xlu0.b32.cont [15/16] 0.0, 128
        %1359 = vxpose.xlu0.b32.end [16/16] 0.0, 128
        %v1360 = vpop.trf.xlu0
        %v1361 = vpop.trf.xlu0
        %v1362 = vpop.trf.xlu0
        %v1363 = vpop.trf.xlu0
        %v1364 = vpop.trf.xlu0
        %v1365 = vpop.trf.xlu0
        %v1366 = vpop.trf.xlu0
        %v1367 = vpop.trf.xlu0
        %v1368 = vpop.trf.xlu0
        %v1369 = vpop.trf.xlu0
        %v1370 = vpop.trf.xlu0
        %v1371 = vpop.trf.xlu0
        %v1372 = vpop.trf.xlu0
        %v1373 = vpop.trf.xlu0
        %v1374 = vpop.trf.xlu0
        %v1375 = vpop.trf.xlu0
        %1376 = vxpose.xlu0.b32.start [1/16] %v835, 128
        %1377 = vxpose.xlu0.b32.cont [2/16] 0.0, 128
        %1378 = vxpose.xlu0.b32.cont [3/16] 0.0, 128
        %1379 = vxpose.xlu0.b32.cont [4/16] 0.0, 128
        %1380 = vxpose.xlu0.b32.cont [5/16] 0.0, 128
        %1381 = vxpose.xlu0.b32.cont [6/16] 0.0, 128
        %1382 = vxpose.xlu0.b32.cont [7/16] 0.0, 128
        %1383 = vxpose.xlu0.b32.cont [8/16] 0.0, 128
        %1384 = vxpose.xlu0.b32.cont [9/16] 0.0, 128
        %1385 = vxpose.xlu0.b32.cont [10/16] 0.0, 128
        %1386 = vxpose.xlu0.b32.cont [11/16] 0.0, 128
        %1387 = vxpose.xlu0.b32.cont [12/16] 0.0, 128
        %1388 = vxpose.xlu0.b32.cont [13/16] 0.0, 128
        %1389 = vxpose.xlu0.b32.cont [14/16] 0.0, 128
        %1390 = vxpose.xlu0.b32.cont [15/16] 0.0, 128
        %1391 = vxpose.xlu0.b32.end [16/16] 0.0, 128
        %v1392 = vpop.trf.xlu0
        %v1393 = vpop.trf.xlu0
        %v1394 = vpop.trf.xlu0
        %v1395 = vpop.trf.xlu0
        %v1396 = vpop.trf.xlu0
        %v1397 = vpop.trf.xlu0
        %v1398 = vpop.trf.xlu0
        %v1399 = vpop.trf.xlu0
        %v1400 = vpop.trf.xlu0
        %v1401 = vpop.trf.xlu0
        %v1402 = vpop.trf.xlu0
        %v1403 = vpop.trf.xlu0
        %v1404 = vpop.trf.xlu0
        %v1405 = vpop.trf.xlu0
        %v1406 = vpop.trf.xlu0
        %v1407 = vpop.trf.xlu0
        %1408 = vxpose.xlu0.b32.start [1/16] %v838, 128
        %1409 = vxpose.xlu0.b32.cont [2/16] 0.0, 128
        %1410 = vxpose.xlu0.b32.cont [3/16] 0.0, 128
        %1411 = vxpose.xlu0.b32.cont [4/16] 0.0, 128
        %1412 = vxpose.xlu0.b32.cont [5/16] 0.0, 128
        %1413 = vxpose.xlu0.b32.cont [6/16] 0.0, 128
        %1414 = vxpose.xlu0.b32.cont [7/16] 0.0, 128
        %1415 = vxpose.xlu0.b32.cont [8/16] 0.0, 128
        %1416 = vxpose.xlu0.b32.cont [9/16] 0.0, 128
        %1417 = vxpose.xlu0.b32.cont [10/16] 0.0, 128
        %1418 = vxpose.xlu0.b32.cont [11/16] 0.0, 128
        %1419 = vxpose.xlu0.b32.cont [12/16] 0.0, 128
        %1420 = vxpose.xlu0.b32.cont [13/16] 0.0, 128
        %1421 = vxpose.xlu0.b32.cont [14/16] 0.0, 128
        %1422 = vxpose.xlu0.b32.cont [15/16] 0.0, 128
        %1423 = vxpose.xlu0.b32.end [16/16] 0.0, 128
        %v1424 = vpop.trf.xlu0
        %v1425 = vpop.trf.xlu0
        %v1426 = vpop.trf.xlu0
        %v1427 = vpop.trf.xlu0
        %v1428 = vpop.trf.xlu0
        %v1429 = vpop.trf.xlu0
        %v1430 = vpop.trf.xlu0
        %v1431 = vpop.trf.xlu0
        %v1432 = vpop.trf.xlu0
        %v1433 = vpop.trf.xlu0
        %v1434 = vpop.trf.xlu0
        %v1435 = vpop.trf.xlu0
        %v1436 = vpop.trf.xlu0
        %v1437 = vpop.trf.xlu0
        %v1438 = vpop.trf.xlu0
        %v1439 = vpop.trf.xlu0
        %v1441 = vsel %vm968, %v1328, 0
        %v1444 = vsel %vm968, %v1308, 0
        %1446 = vmatprep.subr.mxu0 0.0
        %1447 = vmatpush1.xpose.msra.mxu0 %v1444
        %1448 = vmatprep.subr.mxu0 0.0
        %1449 = vmatpush1.xpose.msra.mxu0 0.0
        %1450 = vmatprep.subr.mxu0 0.0
        %1451 = vmatpush1.xpose.msra.mxu0 0.0
        %1452 = vmatprep.subr.mxu0 0.0
        %1453 = vmatpush1.xpose.msra.mxu0 0.0
        %1454 = vmatprep.subr.mxu0 0.0
        %1455 = vmatpush1.xpose.msra.mxu0 0.0
        %1456 = vmatprep.subr.mxu0 0.0
        %1457 = vmatpush1.xpose.msra.mxu0 0.0
        %1458 = vmatprep.subr.mxu0 0.0
        %1459 = vmatpush1.xpose.msra.mxu0 0.0
        %1460 = vmatprep.subr.mxu0 0.0
        %1461 = vmatpush1.xpose.msra.mxu0 0.0
        %1462 = vmatprep.subr.mxu0 0.0
        %1463 = vmatpush1.xpose.msra.mxu0 0.0
        %1464 = vmatprep.subr.mxu0 0.0
        %1465 = vmatpush1.xpose.msra.mxu0 0.0
        %1466 = vmatprep.subr.mxu0 0.0
        %1467 = vmatpush1.xpose.msra.mxu0 0.0
        %1468 = vmatprep.subr.mxu0 0.0
        %1469 = vmatpush1.xpose.msra.mxu0 0.0
        %1470 = vmatprep.subr.mxu0 0.0
        %1471 = vmatpush1.xpose.msra.mxu0 0.0
        %1472 = vmatprep.subr.mxu0 0.0
        %1473 = vmatpush1.xpose.msra.mxu0 0.0
        %1474 = vmatprep.subr.mxu0 0.0
        %1475 = vmatpush1.xpose.msra.mxu0 0.0
        %1476 = vmatprep.subr.mxu0 0.0
        %1477 = vmatpush1.xpose.msra.mxu0 0.0
        %1478 = vmatprep.subr.mxu0 0.0
        %1479 = vmatpush1.xpose.msra.mxu0 0.0
        %1480 = vmatprep.subr.mxu0 0.0
        %1481 = vmatpush1.xpose.msra.mxu0 0.0
        %1482 = vmatprep.subr.mxu0 0.0
        %1483 = vmatpush1.xpose.msra.mxu0 0.0
        %1484 = vmatprep.subr.mxu0 0.0
        %1485 = vmatpush1.xpose.msra.mxu0 0.0
        %1486 = vmatprep.subr.mxu0 0.0
        %1487 = vmatpush1.xpose.msra.mxu0 0.0
        %1488 = vmatprep.subr.mxu0 0.0
        %1489 = vmatpush1.xpose.msra.mxu0 0.0
        %1490 = vmatprep.subr.mxu0 0.0
        %1491 = vmatpush1.xpose.msra.mxu0 0.0
        %1492 = vmatprep.subr.mxu0 0.0
        %1493 = vmatpush1.xpose.msra.mxu0 0.0
        %1494 = vmatprep.subr.mxu0 0.0
        %1495 = vmatpush1.xpose.msra.mxu0 0.0
        %1496 = vmatprep.subr.mxu0 0.0
        %1497 = vmatpush1.xpose.msra.mxu0 0.0
        %1498 = vmatprep.subr.mxu0 0.0
        %1499 = vmatpush1.xpose.msra.mxu0 0.0
        %1500 = vmatprep.subr.mxu0 0.0
        %1501 = vmatpush1.xpose.msra.mxu0 0.0
        %1502 = vmatprep.subr.mxu0 0.0
        %1503 = vmatpush1.xpose.msra.mxu0 0.0
        %1504 = vmatprep.subr.mxu0 0.0
        %1505 = vmatpush1.xpose.msra.mxu0 0.0
        %1506 = vmatprep.subr.mxu0 0.0
        %1507 = vmatpush1.xpose.msra.mxu0 0.0
        %1508 = vmatprep.subr.mxu0 0.0
        %1509 = vmatpush1.xpose.msra.mxu0 0.0
        %1510 = vmatprep.mubr.f32.mxu0 0.0
        %1511 = vmatmul.mubr.f32.gmra.mrb[0].mxu0 %v1441
        %v1512 = vpop.f32.mrb[0].mxu0
        %v1513 = vadd.f32 0.0, %v1512
        %v1514 = vpop.f32.mrb[0].mxu0
        %1515 = vdwg.mxu0
        %v1517 = vsel %vm968, %v1360, 0
        %v1520 = vsel %vm968, %v1309, 0
        %1522 = vmatprep.subr.mxu0 0.0
        %1523 = vmatpush1.xpose.msra.mxu0 %v1520
        %1524 = vmatprep.subr.mxu0 0.0
        %1525 = vmatpush1.xpose.msra.mxu0 0.0
        %1526 = vmatprep.subr.mxu0 0.0
        %1527 = vmatpush1.xpose.msra.mxu0 0.0
        %1528 = vmatprep.subr.mxu0 0.0
        %1529 = vmatpush1.xpose.msra.mxu0 0.0
        %1530 = vmatprep.subr.mxu0 0.0
        %1531 = vmatpush1.xpose.msra.mxu0 0.0
        %1532 = vmatprep.subr.mxu0 0.0
        %1533 = vmatpush1.xpose.msra.mxu0 0.0
        %1534 = vmatprep.subr.mxu0 0.0
        %1535 = vmatpush1.xpose.msra.mxu0 0.0
        %1536 = vmatprep.subr.mxu0 0.0
        %1537 = vmatpush1.xpose.msra.mxu0 0.0
        %1538 = vmatprep.subr.mxu0 0.0
        %1539 = vmatpush1.xpose.msra.mxu0 0.0
        %1540 = vmatprep.subr.mxu0 0.0
        %1541 = vmatpush1.xpose.msra.mxu0 0.0
        %1542 = vmatprep.subr.mxu0 0.0
        %1543 = vmatpush1.xpose.msra.mxu0 0.0
        %1544 = vmatprep.subr.mxu0 0.0
        %1545 = vmatpush1.xpose.msra.mxu0 0.0
        %1546 = vmatprep.subr.mxu0 0.0
        %1547 = vmatpush1.xpose.msra.mxu0 0.0
        %1548 = vmatprep.subr.mxu0 0.0
        %1549 = vmatpush1.xpose.msra.mxu0 0.0
        %1550 = vmatprep.subr.mxu0 0.0
        %1551 = vmatpush1.xpose.msra.mxu0 0.0
        %1552 = vmatprep.subr.mxu0 0.0
        %1553 = vmatpush1.xpose.msra.mxu0 0.0
        %1554 = vmatprep.subr.mxu0 0.0
        %1555 = vmatpush1.xpose.msra.mxu0 0.0
        %1556 = vmatprep.subr.mxu0 0.0
        %1557 = vmatpush1.xpose.msra.mxu0 0.0
        %1558 = vmatprep.subr.mxu0 0.0
        %1559 = vmatpush1.xpose.msra.mxu0 0.0
        %1560 = vmatprep.subr.mxu0 0.0
        %1561 = vmatpush1.xpose.msra.mxu0 0.0
        %1562 = vmatprep.subr.mxu0 0.0
        %1563 = vmatpush1.xpose.msra.mxu0 0.0
        %1564 = vmatprep.subr.mxu0 0.0
        %1565 = vmatpush1.xpose.msra.mxu0 0.0
        %1566 = vmatprep.subr.mxu0 0.0
        %1567 = vmatpush1.xpose.msra.mxu0 0.0
        %1568 = vmatprep.subr.mxu0 0.0
        %1569 = vmatpush1.xpose.msra.mxu0 0.0
        %1570 = vmatprep.subr.mxu0 0.0
        %1571 = vmatpush1.xpose.msra.mxu0 0.0
        %1572 = vmatprep.subr.mxu0 0.0
        %1573 = vmatpush1.xpose.msra.mxu0 0.0
        %1574 = vmatprep.subr.mxu0 0.0
        %1575 = vmatpush1.xpose.msra.mxu0 0.0
        %1576 = vmatprep.subr.mxu0 0.0
        %1577 = vmatpush1.xpose.msra.mxu0 0.0
        %1578 = vmatprep.subr.mxu0 0.0
        %1579 = vmatpush1.xpose.msra.mxu0 0.0
        %1580 = vmatprep.subr.mxu0 0.0
        %1581 = vmatpush1.xpose.msra.mxu0 0.0
        %1582 = vmatprep.subr.mxu0 0.0
        %1583 = vmatpush1.xpose.msra.mxu0 0.0
        %1584 = vmatprep.subr.mxu0 0.0
        %1585 = vmatpush1.xpose.msra.mxu0 0.0
        %1586 = vmatprep.mubr.f32.mxu0 0.0
        %1587 = vmatmul.mubr.f32.gmra.mrb[0].mxu0 %v1517
        %v1588 = vpop.f32.mrb[0].mxu0
        %v1589 = vadd.f32 0.0, %v1588
        %v1590 = vpop.f32.mrb[0].mxu0
        %1591 = vdwg.mxu0
        %v1593 = vsel %vm968, %v1392, 0
        %v1596 = vsel %vm968, %v1310, 0
        %1598 = vmatprep.subr.mxu0 0.0
        %1599 = vmatpush1.xpose.msra.mxu0 %v1596
        %1600 = vmatprep.subr.mxu0 0.0
        %1601 = vmatpush1.xpose.msra.mxu0 0.0
        %1602 = vmatprep.subr.mxu0 0.0
        %1603 = vmatpush1.xpose.msra.mxu0 0.0
        %1604 = vmatprep.subr.mxu0 0.0
        %1605 = vmatpush1.xpose.msra.mxu0 0.0
        %1606 = vmatprep.subr.mxu0 0.0
        %1607 = vmatpush1.xpose.msra.mxu0 0.0
        %1608 = vmatprep.subr.mxu0 0.0
        %1609 = vmatpush1.xpose.msra.mxu0 0.0
        %1610 = vmatprep.subr.mxu0 0.0
        %1611 = vmatpush1.xpose.msra.mxu0 0.0
        %1612 = vmatprep.subr.mxu0 0.0
        %1613 = vmatpush1.xpose.msra.mxu0 0.0
        %1614 = vmatprep.subr.mxu0 0.0
        %1615 = vmatpush1.xpose.msra.mxu0 0.0
        %1616 = vmatprep.subr.mxu0 0.0
        %1617 = vmatpush1.xpose.msra.mxu0 0.0
        %1618 = vmatprep.subr.mxu0 0.0
        %1619 = vmatpush1.xpose.msra.mxu0 0.0
        %1620 = vmatprep.subr.mxu0 0.0
        %1621 = vmatpush1.xpose.msra.mxu0 0.0
        %1622 = vmatprep.subr.mxu0 0.0
        %1623 = vmatpush1.xpose.msra.mxu0 0.0
        %1624 = vmatprep.subr.mxu0 0.0
        %1625 = vmatpush1.xpose.msra.mxu0 0.0
        %1626 = vmatprep.subr.mxu0 0.0
        %1627 = vmatpush1.xpose.msra.mxu0 0.0
        %1628 = vmatprep.subr.mxu0 0.0
        %1629 = vmatpush1.xpose.msra.mxu0 0.0
        %1630 = vmatprep.subr.mxu0 0.0
        %1631 = vmatpush1.xpose.msra.mxu0 0.0
        %1632 = vmatprep.subr.mxu0 0.0
        %1633 = vmatpush1.xpose.msra.mxu0 0.0
        %1634 = vmatprep.subr.mxu0 0.0
        %1635 = vmatpush1.xpose.msra.mxu0 0.0
        %1636 = vmatprep.subr.mxu0 0.0
        %1637 = vmatpush1.xpose.msra.mxu0 0.0
        %1638 = vmatprep.subr.mxu0 0.0
        %1639 = vmatpush1.xpose.msra.mxu0 0.0
        %1640 = vmatprep.subr.mxu0 0.0
        %1641 = vmatpush1.xpose.msra.mxu0 0.0
        %1642 = vmatprep.subr.mxu0 0.0
        %1643 = vmatpush1.xpose.msra.mxu0 0.0
        %1644 = vmatprep.subr.mxu0 0.0
        %1645 = vmatpush1.xpose.msra.mxu0 0.0
        %1646 = vmatprep.subr.mxu0 0.0
        %1647 = vmatpush1.xpose.msra.mxu0 0.0
        %1648 = vmatprep.subr.mxu0 0.0
        %1649 = vmatpush1.xpose.msra.mxu0 0.0
        %1650 = vmatprep.subr.mxu0 0.0
        %1651 = vmatpush1.xpose.msra.mxu0 0.0
        %1652 = vmatprep.subr.mxu0 0.0
        %1653 = vmatpush1.xpose.msra.mxu0 0.0
        %1654 = vmatprep.subr.mxu0 0.0
        %1655 = vmatpush1.xpose.msra.mxu0 0.0
        %1656 = vmatprep.subr.mxu0 0.0
        %1657 = vmatpush1.xpose.msra.mxu0 0.0
        %1658 = vmatprep.subr.mxu0 0.0
        %1659 = vmatpush1.xpose.msra.mxu0 0.0
        %1660 = vmatprep.subr.mxu0 0.0
        %1661 = vmatpush1.xpose.msra.mxu0 0.0
        %1662 = vmatprep.mubr.f32.mxu0 0.0
        %1663 = vmatmul.mubr.f32.gmra.mrb[0].mxu0 %v1593
        %v1664 = vpop.f32.mrb[0].mxu0
        %v1665 = vadd.f32 0.0, %v1664
        %v1666 = vpop.f32.mrb[0].mxu0
        %1667 = vdwg.mxu0
        %v1669 = vsel %vm968, %v1424, 0
        %v1672 = vsel %vm968, %v1311, 0
        %1674 = vmatprep.subr.mxu0 0.0
        %1675 = vmatpush1.xpose.msra.mxu0 %v1672
        %1676 = vmatprep.subr.mxu0 0.0
        %1677 = vmatpush1.xpose.msra.mxu0 0.0
        %1678 = vmatprep.subr.mxu0 0.0
        %1679 = vmatpush1.xpose.msra.mxu0 0.0
        %1680 = vmatprep.subr.mxu0 0.0
        %1681 = vmatpush1.xpose.msra.mxu0 0.0
        %1682 = vmatprep.subr.mxu0 0.0
        %1683 = vmatpush1.xpose.msra.mxu0 0.0
        %1684 = vmatprep.subr.mxu0 0.0
        %1685 = vmatpush1.xpose.msra.mxu0 0.0
        %1686 = vmatprep.subr.mxu0 0.0
        %1687 = vmatpush1.xpose.msra.mxu0 0.0
        %1688 = vmatprep.subr.mxu0 0.0
        %1689 = vmatpush1.xpose.msra.mxu0 0.0
        %1690 = vmatprep.subr.mxu0 0.0
        %1691 = vmatpush1.xpose.msra.mxu0 0.0
        %1692 = vmatprep.subr.mxu0 0.0
        %1693 = vmatpush1.xpose.msra.mxu0 0.0
        %1694 = vmatprep.subr.mxu0 0.0
        %1695 = vmatpush1.xpose.msra.mxu0 0.0
        %1696 = vmatprep.subr.mxu0 0.0
        %1697 = vmatpush1.xpose.msra.mxu0 0.0
        %1698 = vmatprep.subr.mxu0 0.0
        %1699 = vmatpush1.xpose.msra.mxu0 0.0
        %1700 = vmatprep.subr.mxu0 0.0
        %1701 = vmatpush1.xpose.msra.mxu0 0.0
        %1702 = vmatprep.subr.mxu0 0.0
        %1703 = vmatpush1.xpose.msra.mxu0 0.0
        %1704 = vmatprep.subr.mxu0 0.0
        %1705 = vmatpush1.xpose.msra.mxu0 0.0
        %1706 = vmatprep.subr.mxu0 0.0
        %1707 = vmatpush1.xpose.msra.mxu0 0.0
        %1708 = vmatprep.subr.mxu0 0.0
        %1709 = vmatpush1.xpose.msra.mxu0 0.0
        %1710 = vmatprep.subr.mxu0 0.0
        %1711 = vmatpush1.xpose.msra.mxu0 0.0
        %1712 = vmatprep.subr.mxu0 0.0
        %1713 = vmatpush1.xpose.msra.mxu0 0.0
        %1714 = vmatprep.subr.mxu0 0.0
        %1715 = vmatpush1.xpose.msra.mxu0 0.0
        %1716 = vmatprep.subr.mxu0 0.0
        %1717 = vmatpush1.xpose.msra.mxu0 0.0
        %1718 = vmatprep.subr.mxu0 0.0
        %1719 = vmatpush1.xpose.msra.mxu0 0.0
        %1720 = vmatprep.subr.mxu0 0.0
        %1721 = vmatpush1.xpose.msra.mxu0 0.0
        %1722 = vmatprep.subr.mxu0 0.0
        %1723 = vmatpush1.xpose.msra.mxu0 0.0
        %1724 = vmatprep.subr.mxu0 0.0
        %1725 = vmatpush1.xpose.msra.mxu0 0.0
        %1726 = vmatprep.subr.mxu0 0.0
        %1727 = vmatpush1.xpose.msra.mxu0 0.0
        %1728 = vmatprep.subr.mxu0 0.0
        %1729 = vmatpush1.xpose.msra.mxu0 0.0
        %1730 = vmatprep.subr.mxu0 0.0
        %1731 = vmatpush1.xpose.msra.mxu0 0.0
        %1732 = vmatprep.subr.mxu0 0.0
        %1733 = vmatpush1.xpose.msra.mxu0 0.0
        %1734 = vmatprep.subr.mxu0 0.0
        %1735 = vmatpush1.xpose.msra.mxu0 0.0
        %1736 = vmatprep.subr.mxu0 0.0
        %1737 = vmatpush1.xpose.msra.mxu0 0.0
        %1738 = vmatprep.mubr.f32.mxu0 0.0
        %1739 = vmatmul.mubr.f32.gmra.mrb[0].mxu0 %v1669
        %v1740 = vpop.f32.mrb[0].mxu0
        %v1741 = vadd.f32 0.0, %v1740
        %v1742 = vpop.f32.mrb[0].mxu0
        %1743 = vdwg.mxu0
        %1744 = vxpose.xlu0.b32.start [1/16] %v1513, 128
        %1745 = vxpose.xlu0.b32.cont [2/16] 0.0, 128
        %1746 = vxpose.xlu0.b32.cont [3/16] 0.0, 128
        %1747 = vxpose.xlu0.b32.cont [4/16] 0.0, 128
        %1748 = vxpose.xlu0.b32.cont [5/16] 0.0, 128
        %1749 = vxpose.xlu0.b32.cont [6/16] 0.0, 128
        %1750 = vxpose.xlu0.b32.cont [7/16] 0.0, 128
        %1751 = vxpose.xlu0.b32.cont [8/16] 0.0, 128
        %1752 = vxpose.xlu0.b32.cont [9/16] 0.0, 128
        %1753 = vxpose.xlu0.b32.cont [10/16] 0.0, 128
        %1754 = vxpose.xlu0.b32.cont [11/16] 0.0, 128
        %1755 = vxpose.xlu0.b32.cont [12/16] 0.0, 128
        %1756 = vxpose.xlu0.b32.cont [13/16] 0.0, 128
        %1757 = vxpose.xlu0.b32.cont [14/16] 0.0, 128
        %1758 = vxpose.xlu0.b32.cont [15/16] 0.0, 128
        %1759 = vxpose.xlu0.b32.end [16/16] 0.0, 128
        %v1760 = vpop.trf.xlu0
        %v1761 = vpop.trf.xlu0
        %v1762 = vpop.trf.xlu0
        %v1763 = vpop.trf.xlu0
        %v1764 = vpop.trf.xlu0
        %v1765 = vpop.trf.xlu0
        %v1766 = vpop.trf.xlu0
        %v1767 = vpop.trf.xlu0
        %v1768 = vpop.trf.xlu0
        %v1769 = vpop.trf.xlu0
        %v1770 = vpop.trf.xlu0
        %v1771 = vpop.trf.xlu0
        %v1772 = vpop.trf.xlu0
        %v1773 = vpop.trf.xlu0
        %v1774 = vpop.trf.xlu0
        %v1775 = vpop.trf.xlu0
        %1776 = vxpose.xlu0.b32.start [1/16] %v1589, 128
        %1777 = vxpose.xlu0.b32.cont [2/16] 0.0, 128
        %1778 = vxpose.xlu0.b32.cont [3/16] 0.0, 128
        %1779 = vxpose.xlu0.b32.cont [4/16] 0.0, 128
        %1780 = vxpose.xlu0.b32.cont [5/16] 0.0, 128
        %1781 = vxpose.xlu0.b32.cont [6/16] 0.0, 128
        %1782 = vxpose.xlu0.b32.cont [7/16] 0.0, 128
        %1783 = vxpose.xlu0.b32.cont [8/16] 0.0, 128
        %1784 = vxpose.xlu0.b32.cont [9/16] 0.0, 128
        %1785 = vxpose.xlu0.b32.cont [10/16] 0.0, 128
        %1786 = vxpose.xlu0.b32.cont [11/16] 0.0, 128
        %1787 = vxpose.xlu0.b32.cont [12/16] 0.0, 128
        %1788 = vxpose.xlu0.b32.cont [13/16] 0.0, 128
        %1789 = vxpose.xlu0.b32.cont [14/16] 0.0, 128
        %1790 = vxpose.xlu0.b32.cont [15/16] 0.0, 128
        %1791 = vxpose.xlu0.b32.end [16/16] 0.0, 128
        %v1792 = vpop.trf.xlu0
        %v1793 = vpop.trf.xlu0
        %v1794 = vpop.trf.xlu0
        %v1795 = vpop.trf.xlu0
        %v1796 = vpop.trf.xlu0
        %v1797 = vpop.trf.xlu0
        %v1798 = vpop.trf.xlu0
        %v1799 = vpop.trf.xlu0
        %v1800 = vpop.trf.xlu0
        %v1801 = vpop.trf.xlu0
        %v1802 = vpop.trf.xlu0
        %v1803 = vpop.trf.xlu0
        %v1804 = vpop.trf.xlu0
        %v1805 = vpop.trf.xlu0
        %v1806 = vpop.trf.xlu0
        %v1807 = vpop.trf.xlu0
        %1808 = vxpose.xlu0.b32.start [1/16] %v1665, 128
        %1809 = vxpose.xlu0.b32.cont [2/16] 0.0, 128
        %1810 = vxpose.xlu0.b32.cont [3/16] 0.0, 128
        %1811 = vxpose.xlu0.b32.cont [4/16] 0.0, 128
        %1812 = vxpose.xlu0.b32.cont [5/16] 0.0, 128
        %1813 = vxpose.xlu0.b32.cont [6/16] 0.0, 128
        %1814 = vxpose.xlu0.b32.cont [7/16] 0.0, 128
        %1815 = vxpose.xlu0.b32.cont [8/16] 0.0, 128
        %1816 = vxpose.xlu0.b32.cont [9/16] 0.0, 128
        %1817 = vxpose.xlu0.b32.cont [10/16] 0.0, 128
        %1818 = vxpose.xlu0.b32.cont [11/16] 0.0, 128
        %1819 = vxpose.xlu0.b32.cont [12/16] 0.0, 128
        %1820 = vxpose.xlu0.b32.cont [13/16] 0.0, 128
        %1821 = vxpose.xlu0.b32.cont [14/16] 0.0, 128
        %1822 = vxpose.xlu0.b32.cont [15/16] 0.0, 128
        %1823 = vxpose.xlu0.b32.end [16/16] 0.0, 128
        %v1824 = vpop.trf.xlu0
        %v1825 = vpop.trf.xlu0
        %v1826 = vpop.trf.xlu0
        %v1827 = vpop.trf.xlu0
        %v1828 = vpop.trf.xlu0
        %v1829 = vpop.trf.xlu0
        %v1830 = vpop.trf.xlu0
        %v1831 = vpop.trf.xlu0
        %v1832 = vpop.trf.xlu0
        %v1833 = vpop.trf.xlu0
        %v1834 = vpop.trf.xlu0
        %v1835 = vpop.trf.xlu0
        %v1836 = vpop.trf.xlu0
        %v1837 = vpop.trf.xlu0
        %v1838 = vpop.trf.xlu0
        %v1839 = vpop.trf.xlu0
        %1840 = vxpose.xlu0.b32.start [1/16] %v1741, 128
        %1841 = vxpose.xlu0.b32.cont [2/16] 0.0, 128
        %1842 = vxpose.xlu0.b32.cont [3/16] 0.0, 128
        %1843 = vxpose.xlu0.b32.cont [4/16] 0.0, 128
        %1844 = vxpose.xlu0.b32.cont [5/16] 0.0, 128
        %1845 = vxpose.xlu0.b32.cont [6/16] 0.0, 128
        %1846 = vxpose.xlu0.b32.cont [7/16] 0.0, 128
        %1847 = vxpose.xlu0.b32.cont [8/16] 0.0, 128
        %1848 = vxpose.xlu0.b32.cont [9/16] 0.0, 128
        %1849 = vxpose.xlu0.b32.cont [10/16] 0.0, 128
        %1850 = vxpose.xlu0.b32.cont [11/16] 0.0, 128
        %1851 = vxpose.xlu0.b32.cont [12/16] 0.0, 128
        %1852 = vxpose.xlu0.b32.cont [13/16] 0.0, 128
        %1853 = vxpose.xlu0.b32.cont [14/16] 0.0, 128
        %1854 = vxpose.xlu0.b32.cont [15/16] 0.0, 128
        %1855 = vxpose.xlu0.b32.end [16/16] 0.0, 128
        %v1856 = vpop.trf.xlu0
        %v1857 = vpop.trf.xlu0
        %v1858 = vpop.trf.xlu0
        %v1859 = vpop.trf.xlu0
        %v1860 = vpop.trf.xlu0
        %v1861 = vpop.trf.xlu0
        %v1862 = vpop.trf.xlu0
        %v1863 = vpop.trf.xlu0
        %v1864 = vpop.trf.xlu0
        %v1865 = vpop.trf.xlu0
        %v1866 = vpop.trf.xlu0
        %v1867 = vpop.trf.xlu0
        %v1868 = vpop.trf.xlu0
        %v1869 = vpop.trf.xlu0
        %v1870 = vpop.trf.xlu0
        %v1871 = vpop.trf.xlu0
        %v1872 = vcombine.low %v1760, %v1824
        %v1873 = vcombine.high %v1760, %v1824
        %v1875 = vunpack.c.l.s4 1983009808
        %v1876 = vunpack.c.0.s8 %v1875
        %v1877 = vlaneseq
        %v1878 = vshrl.u32 %v1877, 7
        %v1879 = vsub.s32 %v1876, %v1878
        %v1880 = vrot.slane %v1872, %v1879
        %v1882 = vunpack.c.l.s4 1983009808
        %v1883 = vunpack.c.0.s8 %v1882
        %v1884 = vlaneseq
        %v1885 = vshrl.u32 %v1884, 7
        %v1886 = vsub.s32 %v1883, %v1885
        %v1887 = vrot.slane %v1873, %v1886
        %v1888 = vcombine.low %v1792, %v1856
        %v1889 = vcombine.high %v1792, %v1856
        %v1891 = vunpack.c.l.s4 1983009808
        %v1892 = vunpack.c.0.s8 %v1891
        %v1893 = vlaneseq
        %v1894 = vshrl.u32 %v1893, 7
        %v1895 = vsub.s32 %v1892, %v1894
        %v1896 = vrot.slane %v1888, %v1895
        %v1898 = vunpack.c.l.s4 1983009808
        %v1899 = vunpack.c.0.s8 %v1898
        %v1900 = vlaneseq
        %v1901 = vshrl.u32 %v1900, 7
        %v1902 = vsub.s32 %v1899, %v1901
        %v1903 = vrot.slane %v1889, %v1902
        %v1904 = vcombine.low %v1880, %v1896
        %v1905 = vcombine.high %v1880, %v1896
        %v1907 = vunpack.c.l.s4 1934713408
        %v1908 = vunpack.c.0.s8 %v1907
        %v1909 = vlaneseq
        %v1910 = vshrl.u32 %v1909, 7
        %v1911 = vsub.s32 %v1908, %v1910
        %v1912 = vrot.slane %v1904, %v1911
        %v1914 = vunpack.c.l.s4 1934713408
        %v1915 = vunpack.c.0.s8 %v1914
        %v1916 = vlaneseq
        %v1917 = vshrl.u32 %v1916, 7
        %v1918 = vsub.s32 %v1915, %v1917
        %v1919 = vrot.slane %v1905, %v1918
        %v1920 = vcombine.low %v1887, %v1903
        %v1921 = vcombine.high %v1887, %v1903
        %v1923 = vunpack.c.l.s4 1934713408
        %v1924 = vunpack.c.0.s8 %v1923
        %v1925 = vlaneseq
        %v1926 = vshrl.u32 %v1925, 7
        %v1927 = vsub.s32 %v1924, %v1926
        %v1928 = vrot.slane %v1920, %v1927
        %v1930 = vunpack.c.l.s4 1934713408
        %v1931 = vunpack.c.0.s8 %v1930
        %v1932 = vlaneseq
        %v1933 = vshrl.u32 %v1932, 7
        %v1934 = vsub.s32 %v1931, %v1933
        %v1935 = vrot.slane %v1921, %v1934
        %v1936 = vcombine.high %v1912, 0.0
        %v1937 = vcombine.high %v1919, 0.0
        %v1938 = vcombine.high %v1928, 0.0
        %v1939 = vcombine.high %v1935, 0.0
        %v1940 = vcombine.low %v1912, %v1919
        %v1942 = vunpack.c.l.s4 1983009808
        %v1943 = vunpack.c.0.s8 %v1942
        %v1944 = vlaneseq
        %v1945 = vshrl.u32 %v1944, 7
        %v1946 = vsub.s32 %v1943, %v1945
        %v1947 = vrot.slane %v1940, %v1946
        %v1948 = vcombine.low %v1936, %v1937
        %v1950 = vunpack.c.l.s4 1983009808
        %v1951 = vunpack.c.0.s8 %v1950
        %v1952 = vlaneseq
        %v1953 = vshrl.u32 %v1952, 7
        %v1954 = vsub.s32 %v1951, %v1953
        %v1955 = vrot.slane %v1948, %v1954
        %v1956 = vcombine.low %v1928, %v1935
        %v1958 = vunpack.c.l.s4 1983009808
        %v1959 = vunpack.c.0.s8 %v1958
        %v1960 = vlaneseq
        %v1961 = vshrl.u32 %v1960, 7
        %v1962 = vsub.s32 %v1959, %v1961
        %v1963 = vrot.slane %v1956, %v1962
        %v1964 = vcombine.low %v1938, %v1939
        %v1966 = vunpack.c.l.s4 1983009808
        %v1967 = vunpack.c.0.s8 %v1966
        %v1968 = vlaneseq
        %v1969 = vshrl.u32 %v1968, 7
        %v1970 = vsub.s32 %v1967, %v1969
        %v1971 = vrot.slane %v1964, %v1970
        %v1972 = vcombine.low %v1947, %v1955
        %v1973 = vcombine.high %v1947, %v1955
        %v1975 = vunpack.c.l.s4 1934713408
        %v1976 = vunpack.c.0.s8 %v1975
        %v1977 = vlaneseq
        %v1978 = vshrl.u32 %v1977, 7
        %v1979 = vsub.s32 %v1976, %v1978
        %v1980 = vrot.slane %v1972, %v1979
        %v1982 = vunpack.c.l.s4 1934713408
        %v1983 = vunpack.c.0.s8 %v1982
        %v1984 = vlaneseq
        %v1985 = vshrl.u32 %v1984, 7
        %v1986 = vsub.s32 %v1983, %v1985
        %v1987 = vrot.slane %v1973, %v1986
        %v1988 = vcombine.low %v1963, %v1971
        %v1989 = vcombine.high %v1963, %v1971
        %v1991 = vunpack.c.l.s4 1934713408
        %v1992 = vunpack.c.0.s8 %v1991
        %v1993 = vlaneseq
        %v1994 = vshrl.u32 %v1993, 7
        %v1995 = vsub.s32 %v1992, %v1994
        %v1996 = vrot.slane %v1988, %v1995
        %v1998 = vunpack.c.l.s4 1934713408
        %v1999 = vunpack.c.0.s8 %v1998
        %v2000 = vlaneseq
        %v2001 = vshrl.u32 %v2000, 7
        %v2002 = vsub.s32 %v1999, %v2001
        %v2003 = vrot.slane %v1989, %v2002
        %v2004 = vcombine.low %v1980, %v1996
        %v2005 = vcombine.high %v1980, %v1996
        %v2006 = vcombine.low %v1987, %v2003
        %v2007 = vcombine.high %v1987, %v2003
        %2009 = vrot.lane.b32.xlu0 %v2005, 8
        %v2010 = vpop.permute.xlu0 %2009
        %2013 = vrot.lane.b32.xlu0 %v2006, 16
        %v2014 = vpop.permute.xlu0 %2013
        %2017 = vrot.lane.b32.xlu0 %v2007, 24
        %v2018 = vpop.permute.xlu0 %2017
        %v2020 = vsel %vm968, %v2004, %v2010
        %vm2021 = vcmask 130048
        %v2022 = vsel %vm2021, %v2020, %v2014
        %vm2023 = vcmask 195584
        %v2024 = vsel %vm2023, %v2022, %v2018
        %v2025 = vld [vmem:[%s7] sm:$0xff]
        %v2026 = vld [vmem:[%s7 + $0x8] sm:$0xff]
        %v2027 = vld [vmem:[%s7 + $0x10] sm:$0xff]
        %v2028 = vld [vmem:[%s7 + $0x18] sm:$0xff]
        %v2029 = vld [vmem:[%s8] sm:$0x1]
        %v2031 = vlaneseq
        %v2032 = vshrl.u32 %v2031, 7
        %v2033 = vsub.s32 0, %v2032
        %v2034 = vrot.slane %v2029, %v2033
        %v2037 = vsel %vm576, %v2024, 0
        %2039 = vmatprep.subr.mxu0 0.0
        %2040 = vmatpush1.msra.mxu0 %v2025
        %2041 = vmatprep.subr.mxu0 0.0
        %2042 = vmatpush1.msra.mxu0 %v2026
        %2043 = vmatprep.subr.mxu0 0.0
        %2044 = vmatpush1.msra.mxu0 %v2027
        %2045 = vmatprep.subr.mxu0 0.0
        %2046 = vmatpush1.msra.mxu0 %v2028
        %2047 = vmatprep.subr.mxu0 0.0
        %2048 = vmatpush1.msra.mxu0 0.0
        %2049 = vmatprep.subr.mxu0 0.0
        %2050 = vmatpush1.msra.mxu0 0.0
        %2051 = vmatprep.subr.mxu0 0.0
        %2052 = vmatpush1.msra.mxu0 0.0
        %2053 = vmatprep.subr.mxu0 0.0
        %2054 = vmatpush1.msra.mxu0 0.0
        %2055 = vmatprep.subr.mxu0 0.0
        %2056 = vmatpush1.msra.mxu0 0.0
        %2057 = vmatprep.subr.mxu0 0.0
        %2058 = vmatpush1.msra.mxu0 0.0
        %2059 = vmatprep.subr.mxu0 0.0
        %2060 = vmatpush1.msra.mxu0 0.0
        %2061 = vmatprep.subr.mxu0 0.0
        %2062 = vmatpush1.msra.mxu0 0.0
        %2063 = vmatprep.subr.mxu0 0.0
        %2064 = vmatpush1.msra.mxu0 0.0
        %2065 = vmatprep.subr.mxu0 0.0
        %2066 = vmatpush1.msra.mxu0 0.0
        %2067 = vmatprep.subr.mxu0 0.0
        %2068 = vmatpush1.msra.mxu0 0.0
        %2069 = vmatprep.subr.mxu0 0.0
        %2070 = vmatpush1.msra.mxu0 0.0
        %2071 = vmatprep.subr.mxu0 0.0
        %2072 = vmatpush1.msra.mxu0 0.0
        %2073 = vmatprep.subr.mxu0 0.0
        %2074 = vmatpush1.msra.mxu0 0.0
        %2075 = vmatprep.subr.mxu0 0.0
        %2076 = vmatpush1.msra.mxu0 0.0
        %2077 = vmatprep.subr.mxu0 0.0
        %2078 = vmatpush1.msra.mxu0 0.0
        %2079 = vmatprep.subr.mxu0 0.0
        %2080 = vmatpush1.msra.mxu0 0.0
        %2081 = vmatprep.subr.mxu0 0.0
        %2082 = vmatpush1.msra.mxu0 0.0
        %2083 = vmatprep.subr.mxu0 0.0
        %2084 = vmatpush1.msra.mxu0 0.0
        %2085 = vmatprep.subr.mxu0 0.0
        %2086 = vmatpush1.msra.mxu0 0.0
        %2087 = vmatprep.subr.mxu0 0.0
        %2088 = vmatpush1.msra.mxu0 0.0
        %2089 = vmatprep.subr.mxu0 0.0
        %2090 = vmatpush1.msra.mxu0 0.0
        %2091 = vmatprep.subr.mxu0 0.0
        %2092 = vmatpush1.msra.mxu0 0.0
        %2093 = vmatprep.subr.mxu0 0.0
        %2094 = vmatpush1.msra.mxu0 0.0
        %2095 = vmatprep.subr.mxu0 0.0
        %2096 = vmatpush1.msra.mxu0 0.0
        %2097 = vmatprep.subr.mxu0 0.0
        %2098 = vmatpush1.msra.mxu0 0.0
        %2099 = vmatprep.subr.mxu0 0.0
        %2100 = vmatpush1.msra.mxu0 0.0
        %2101 = vmatprep.subr.mxu0 0.0
        %2102 = vmatpush1.msra.mxu0 0.0
        %2103 = vmatprep.mubr.f32.mxu0 0.0
        %2104 = vmatmul.mubr.f32.gmra.mrb[0].mxu0 %v2037
        %v2105 = vpop.f32.mrb[0].mxu0
        %v2106 = vadd.f32 %v2034, %v2105
        %v2107 = vpop.f32.mrb[0].mxu0
        %2108 = vdwg.mxu0
        %v2109 = vadd.f32 %v2106, %v564
        %v2110 = vld [vmem:[%s9] sm:$0x1]
        %v2111 = vld [vmem:[%s10] sm:$0x1]
        %v2112 = vsel %vm576, %v2109, 0.0
        %2113 = vadd.xlane.f32.xlu0 %v2112
        %v2114 = vpop.xlane.xlu0 %2113
        %v2115 = vrcp.pop 32.0
        %v2116 = vmul.f32 %v2114, %v2115
        %v2117 = vsub.f32 %v2109, %v2116
        %v2118 = vmul.f32 %v2117, %v2117
        %v2119 = vsel %vm576, %v2118, 0.0
        %2120 = vadd.xlane.f32.xlu0 %v2119
        %v2121 = vpop.xlane.xlu0 %2120
        %v2122 = vmul.f32 %v2121, %v2115
        %v2123 = vadd.f32 %v2122, 1e-06
        %v2124 = vrsqrt.pop %v2123
        %v2125 = vmul.f32 %v2117, %v2124
        %v2127 = vlaneseq
        %v2128 = vshrl.u32 %v2127, 7
        %v2129 = vsub.s32 0, %v2128
        %v2130 = vrot.slane %v2110, %v2129
        %v2132 = vmul.f32 %v2125, %v2130
        %v2134 = vlaneseq
        %v2135 = vshrl.u32 %v2134, 7
        %v2136 = vsub.s32 0, %v2135
        %v2137 = vrot.slane %v2111, %v2136
        %v2139 = vadd.f32 %v2132, %v2137
        %v2140 = vld [vmem:[%s11] sm:$0xff]
        %v2141 = vld [vmem:[%s11 + $0x8] sm:$0xff]
        %v2142 = vld [vmem:[%s11 + $0x10] sm:$0xff]
        %v2143 = vld [vmem:[%s11 + $0x18] sm:$0xff]
        %v2144 = vld [vmem:[%s12] sm:$0x1]
        %v2146 = vlaneseq
        %v2147 = vshrl.u32 %v2146, 7
        %v2148 = vsub.s32 0, %v2147
        %v2149 = vrot.slane %v2144, %v2148
        %v2152 = vsel %vm576, %v2139, 0
        %2154 = vmatprep.subr.mxu0 0.0
        %2155 = vmatpush1.msra.mxu0 %v2140
        %2156 = vmatprep.subr.mxu0 0.0
        %2157 = vmatpush1.msra.mxu0 %v2141
        %2158 = vmatprep.subr.mxu0 0.0
        %2159 = vmatpush1.msra.mxu0 %v2142
        %2160 = vmatprep.subr.mxu0 0.0
        %2161 = vmatpush1.msra.mxu0 %v2143
        %2162 = vmatprep.subr.mxu0 0.0
        %2163 = vmatpush1.msra.mxu0 0.0
        %2164 = vmatprep.subr.mxu0 0.0
        %2165 = vmatpush1.msra.mxu0 0.0
        %2166 = vmatprep.subr.mxu0 0.0
        %2167 = vmatpush1.msra.mxu0 0.0
        %2168 = vmatprep.subr.mxu0 0.0
        %2169 = vmatpush1.msra.mxu0 0.0
        %2170 = vmatprep.subr.mxu0 0.0
        %2171 = vmatpush1.msra.mxu0 0.0
        %2172 = vmatprep.subr.mxu0 0.0
        %2173 = vmatpush1.msra.mxu0 0.0
        %2174 = vmatprep.subr.mxu0 0.0
        %2175 = vmatpush1.msra.mxu0 0.0
        %2176 = vmatprep.subr.mxu0 0.0
        %2177 = vmatpush1.msra.mxu0 0.0
        %2178 = vmatprep.subr.mxu0 0.0
        %2179 = vmatpush1.msra.mxu0 0.0
        %2180 = vmatprep.subr.mxu0 0.0
        %2181 = vmatpush1.msra.mxu0 0.0
        %2182 = vmatprep.subr.mxu0 0.0
        %2183 = vmatpush1.msra.mxu0 0.0
        %2184 = vmatprep.subr.mxu0 0.0
        %2185 = vmatpush1.msra.mxu0 0.0
        %2186 = vmatprep.subr.mxu0 0.0
        %2187 = vmatpush1.msra.mxu0 0.0
        %2188 = vmatprep.subr.mxu0 0.0
        %2189 = vmatpush1.msra.mxu0 0.0
        %2190 = vmatprep.subr.mxu0 0.0
        %2191 = vmatpush1.msra.mxu0 0.0
        %2192 = vmatprep.subr.mxu0 0.0
        %2193 = vmatpush1.msra.mxu0 0.0
        %2194 = vmatprep.subr.mxu0 0.0
        %2195 = vmatpush1.msra.mxu0 0.0
        %2196 = vmatprep.subr.mxu0 0.0
        %2197 = vmatpush1.msra.mxu0 0.0
        %2198 = vmatprep.subr.mxu0 0.0
        %2199 = vmatpush1.msra.mxu0 0.0
        %2200 = vmatprep.subr.mxu0 0.0
        %2201 = vmatpush1.msra.mxu0 0.0
        %2202 = vmatprep.subr.mxu0 0.0
        %2203 = vmatpush1.msra.mxu0 0.0
        %2204 = vmatprep.subr.mxu0 0.0
        %2205 = vmatpush1.msra.mxu0 0.0
        %2206 = vmatprep.subr.mxu0 0.0
        %2207 = vmatpush1.msra.mxu0 0.0
        %2208 = vmatprep.subr.mxu0 0.0
        %2209 = vmatpush1.msra.mxu0 0.0
        %2210 = vmatprep.subr.mxu0 0.0
        %2211 = vmatpush1.msra.mxu0 0.0
        %2212 = vmatprep.subr.mxu0 0.0
        %2213 = vmatpush1.msra.mxu0 0.0
        %2214 = vmatprep.subr.mxu0 0.0
        %2215 = vmatpush1.msra.mxu0 0.0
        %2216 = vmatprep.subr.mxu0 0.0
        %2217 = vmatpush1.msra.mxu0 0.0
        %2218 = vmatprep.mubr.f32.mxu0 0.0
        %2219 = vmatmul.mubr.f32.gmra.mrb[0].mxu0 %v2152
        %v2220 = vpop.f32.mrb[0].mxu0
        %v2221 = vadd.f32 %v2149, %v2220
        %v2222 = vpop.f32.mrb[0].mxu0
        %2223 = vdwg.mxu0
        %v2224 = vmax.f32 %v2221, 0.0
        %v2225 = vld [vmem:[%s13] sm:$0xff]
        %v2226 = vld [vmem:[%s13 + $0x8] sm:$0xff]
        %v2227 = vld [vmem:[%s13 + $0x10] sm:$0xff]
        %v2228 = vld [vmem:[%s13 + $0x18] sm:$0xff]
        %v2229 = vld [vmem:[%s13 + $0x20] sm:$0xff]
        %v2230 = vld [vmem:[%s13 + $0x28] sm:$0xff]
        %v2231 = vld [vmem:[%s13 + $0x30] sm:$0xff]
        %v2232 = vld [vmem:[%s13 + $0x38] sm:$0xff]
        %v2233 = vld [vmem:[%s13 + $0x40] sm:$0xff]
        %v2234 = vld [vmem:[%s13 + $0x48] sm:$0xff]
        %v2235 = vld [vmem:[%s13 + $0x50] sm:$0xff]
        %v2236 = vld [vmem:[%s13 + $0x58] sm:$0xff]
        %v2237 = vld [vmem:[%s13 + $0x60] sm:$0xff]
        %v2238 = vld [vmem:[%s13 + $0x68] sm:$0xff]
        %v2239 = vld [vmem:[%s13 + $0x70] sm:$0xff]
        %v2240 = vld [vmem:[%s13 + $0x78] sm:$0xff]
        %v2241 = vld [vmem:[%s14] sm:$0x1]
        %v2243 = vlaneseq
        %v2244 = vshrl.u32 %v2243, 7
        %v2245 = vsub.s32 0, %v2244
        %v2246 = vrot.slane %v2241, %v2245
        %2248 = vmatprep.subr.mxu0 0.0
        %2249 = vmatpush1.msra.mxu0 %v2225
        %2250 = vmatprep.subr.mxu0 0.0
        %2251 = vmatpush1.msra.mxu0 %v2226
        %2252 = vmatprep.subr.mxu0 0.0
        %2253 = vmatpush1.msra.mxu0 %v2227
        %2254 = vmatprep.subr.mxu0 0.0
        %2255 = vmatpush1.msra.mxu0 %v2228
        %2256 = vmatprep.subr.mxu0 0.0
        %2257 = vmatpush1.msra.mxu0 %v2229
        %2258 = vmatprep.subr.mxu0 0.0
        %2259 = vmatpush1.msra.mxu0 %v2230
        %2260 = vmatprep.subr.mxu0 0.0
        %2261 = vmatpush1.msra.mxu0 %v2231
        %2262 = vmatprep.subr.mxu0 0.0
        %2263 = vmatpush1.msra.mxu0 %v2232
        %2264 = vmatprep.subr.mxu0 0.0
        %2265 = vmatpush1.msra.mxu0 %v2233
        %2266 = vmatprep.subr.mxu0 0.0
        %2267 = vmatpush1.msra.mxu0 %v2234
        %2268 = vmatprep.subr.mxu0 0.0
        %2269 = vmatpush1.msra.mxu0 %v2235
        %2270 = vmatprep.subr.mxu0 0.0
        %2271 = vmatpush1.msra.mxu0 %v2236
        %2272 = vmatprep.subr.mxu0 0.0
        %2273 = vmatpush1.msra.mxu0 %v2237
        %2274 = vmatprep.subr.mxu0 0.0
        %2275 = vmatpush1.msra.mxu0 %v2238
        %2276 = vmatprep.subr.mxu0 0.0
        %2277 = vmatpush1.msra.mxu0 %v2239
        %2278 = vmatprep.subr.mxu0 0.0
        %2279 = vmatpush1.msra.mxu0 %v2240
        %2280 = vmatprep.subr.mxu0 0.0
        %2281 = vmatpush1.msra.mxu0 0.0
        %2282 = vmatprep.subr.mxu0 0.0
        %2283 = vmatpush1.msra.mxu0 0.0
        %2284 = vmatprep.subr.mxu0 0.0
        %2285 = vmatpush1.msra.mxu0 0.0
        %2286 = vmatprep.subr.mxu0 0.0
        %2287 = vmatpush1.msra.mxu0 0.0
        %2288 = vmatprep.subr.mxu0 0.0
        %2289 = vmatpush1.msra.mxu0 0.0
        %2290 = vmatprep.subr.mxu0 0.0
        %2291 = vmatpush1.msra.mxu0 0.0
        %2292 = vmatprep.subr.mxu0 0.0
        %2293 = vmatpush1.msra.mxu0 0.0
        %2294 = vmatprep.subr.mxu0 0.0
        %2295 = vmatpush1.msra.mxu0 0.0
        %2296 = vmatprep.subr.mxu0 0.0
        %2297 = vmatpush1.msra.mxu0 0.0
        %2298 = vmatprep.subr.mxu0 0.0
        %2299 = vmatpush1.msra.mxu0 0.0
        %2300 = vmatprep.subr.mxu0 0.0
        %2301 = vmatpush1.msra.mxu0 0.0
        %2302 = vmatprep.subr.mxu0 0.0
        %2303 = vmatpush1.msra.mxu0 0.0
        %2304 = vmatprep.subr.mxu0 0.0
        %2305 = vmatpush1.msra.mxu0 0.0
        %2306 = vmatprep.subr.mxu0 0.0
        %2307 = vmatpush1.msra.mxu0 0.0
        %2308 = vmatprep.subr.mxu0 0.0
        %2309 = vmatpush1.msra.mxu0 0.0
        %2310 = vmatprep.subr.mxu0 0.0
        %2311 = vmatpush1.msra.mxu0 0.0
        %2312 = vmatprep.mubr.f32.mxu0 0.0
        %2313 = vmatmul.mubr.f32.gmra.mrb[0].mxu0 %v2224
        %v2314 = vpop.f32.mrb[0].mxu0
        %v2315 = vadd.f32 %v2246, %v2314
        %v2316 = vpop.f32.mrb[0].mxu0
        %2317 = vdwg.mxu0
        %v2318 = vadd.f32 %v2315, %v2139
        %v2319 = vld [vmem:[%s15] sm:$0x1]
        %v2320 = vld [vmem:[%s16] sm:$0x1]
        %v2321 = vsel %vm576, %v2318, 0.0
        %2322 = vadd.xlane.f32.xlu0 %v2321
        %v2323 = vpop.xlane.xlu0 %2322
        %v2324 = vmul.f32 %v2323, %v2115
        %v2325 = vsub.f32 %v2318, %v2324
        %v2326 = vmul.f32 %v2325, %v2325
        %v2327 = vsel %vm576, %v2326, 0.0
        %2328 = vadd.xlane.f32.xlu0 %v2327
        %v2329 = vpop.xlane.xlu0 %2328
        %v2330 = vmul.f32 %v2329, %v2115
        %v2331 = vadd.f32 %v2330, 1e-06
        %v2332 = vrsqrt.pop %v2331
        %v2333 = vmul.f32 %v2325, %v2332
        %v2335 = vlaneseq
        %v2336 = vshrl.u32 %v2335, 7
        %v2337 = vsub.s32 0, %v2336
        %v2338 = vrot.slane %v2319, %v2337
        %v2340 = vmul.f32 %v2333, %v2338
        %v2342 = vlaneseq
        %v2343 = vshrl.u32 %v2342, 7
        %v2344 = vsub.s32 0, %v2343
        %v2345 = vrot.slane %v2320, %v2344
        %v2347 = vadd.f32 %v2340, %v2345
        %2348 = vst.msk [vmem:[%s563] sm:$0xff] %vm576, %v2347
        %s2349 = sand.u32 %s404, 1
        %s2350 = scalar_lea.sflag [#allocation4], %s2349
        %s2351 = sand.u32 %s404, 1
        %s2352 = smul.addr %s2351, 8
        %s2353 = scalar_lea.vmem [#allocation5], %s2352
        // Predicated region
        $region93: #{tpu_custom_call.1} parent=87 // pred_check
          %p2354 = pneg %p414
        $region94: #{tpu_custom_call.1} parent=87 // pred_check_branch
          %2356 = sbr.rel (%p2354) target = $region96
        $region95: #{tpu_custom_call.1} parent=87 // pred_region
          %s2358 = ssub.s32 128, 128
          %2359 = vsyncadd %s2350, %s2358
          %s2360 = smul.addr %s34, 128
          %s2361 = scalar_lea.hbm %s17, %s2360
          %s2363 = sshll.u32 %s2353, 4
          %s2364 = int_to_ptr.vmem [resolvable:$true] %s2363
          %2366 = dma.vmem_to_hbm [thread:$0]  %s2364, 128, %s2361, %s2350
        $region96: #{tpu_custom_call.1} parent=87 // pred_fallthru
          _
      $region88: #{tpu_custom_call.1} parent=5 // pred_fallthru
        _
      %p2367 = scmp.le.s32.totalorder 2, %s29
      // Predicated region
      $region97: #{tpu_custom_call.1} parent=5 // pred_check
        %p2368 = pneg %p2367
      $region98: #{tpu_custom_call.1} parent=5 // pred_check_branch
        %2370 = sbr.rel (%p2368) target = $region100
      $region99: #{tpu_custom_call.1} parent=5 // pred_region
        %s2371 = ssub.s32 %s29, 2
        // Predicated region
        $region101: #{tpu_custom_call.1} parent=99 // pred_check
          %p2372 = pneg %p420
        $region102: #{tpu_custom_call.1} parent=99 // pred_check_branch
          %2374 = sbr.rel (%p2372) target = $region104
        $region103: #{tpu_custom_call.1} parent=99 // pred_region
          %s2375 = sand.u32 %s405, 1
          %s2376 = scalar_lea.sflag [#allocation4], %s2375
          %s2377 = sand.u32 %s405, 1
          %s2378 = smul.addr %s2377, 8
          %s2379 = scalar_lea.vmem [#allocation5], %s2378
          %2380 = dma.done %s2376, 128
        $region104: #{tpu_custom_call.1} parent=99 // pred_fallthru
          _
      $region100: #{tpu_custom_call.1} parent=5 // pred_fallthru
        _
    $region6: #{tpu_custom_call.1} parent=1 // loop_footer
      %s33 = sadd.s32 1, %s29
    $region7: #{tpu_custom_call.1} parent=1 // loop_footer_branch
      %28 = sbr.rel target = $region3
    $region8: #{tpu_custom_call.1} parent=1 // loop_exit
      _
    %2381 = vsyncpa [#allocation3], 1
    %s2382 = scalar_lea.sflag [#allocation3], 1
    %2383 = vsyncpa %s2382, 1
    %2384 = vsyncpa [#allocation4], 1
    %s2385 = scalar_lea.sflag [#allocation4], 1
    %2386 = vsyncpa %s2385, 1

</llo_original>
